<compile_context>
chip_gen: v6e
topology: v6e:2x2x1
jax: 0.10.0
libtpu: 0.0.40
codegen_flags: <defaults>
</compile_context>

<pallas_src>
import math
import functools

import jax
import jax.numpy as jnp
from jax.experimental import pallas as pl
from jax.experimental.pallas import tpu as pltpu


def _mish(x):
    # Mish(x) = x * tanh(softplus(x)); computed in f32 (v5e VPU/EUP has no bf16).
    return x * jnp.tanh(jax.nn.softplus(x))


def mlp_kernel(x_ref, emb_ref,
               tw1s_ref, tw1c_ref, tb1_ref, tw2_ref, tb2_ref,
               mw1as_ref, mw1t_ref, mb1_ref,
               mw2_ref, mb2_ref, mw3_ref, mb3_ref,
               ow_ref, ob_ref,
               out_ref, *, as_dim, compute_dtype):
    cd = compute_dtype
    f32 = jnp.float32

    x = x_ref[...]                              # (TB, as_dim + 1)  f32 slab
    a_s = x[:, :as_dim]                         # (TB, action_dim + state_dim)
    t = x[:, as_dim:as_dim + 1]                 # (TB, 1)

    # ---- sinusoidal positional encoding (no concat: split the tw1 matmul) ----
    arg = t * emb_ref[...]                      # (TB, half)
    sin_a = jnp.sin(arg)
    cos_a = jnp.cos(arg)

    # ---- time_mlp: Linear -> Mish -> Linear ----
    h = (jnp.dot(sin_a.astype(cd), tw1s_ref[...], preferred_element_type=f32)
         + jnp.dot(cos_a.astype(cd), tw1c_ref[...], preferred_element_type=f32)
         + tb1_ref[...])
    h = _mish(h)
    t_emb = jnp.dot(h.astype(cd), tw2_ref[...], preferred_element_type=f32) + tb2_ref[...]

    # ---- mid_layer (concat [a, state, t_emb] replaced by split matmul) ----
    z = (jnp.dot(a_s.astype(cd), mw1as_ref[...], preferred_element_type=f32)
         + jnp.dot(t_emb.astype(cd), mw1t_ref[...], preferred_element_type=f32)
         + mb1_ref[...])
    z = _mish(z)
    z = _mish(jnp.dot(z.astype(cd), mw2_ref[...], preferred_element_type=f32) + mb2_ref[...])
    z = _mish(jnp.dot(z.astype(cd), mw3_ref[...], preferred_element_type=f32) + mb3_ref[...])

    # ---- output_layer (padded to lane-dense width; unmasked stores) ----
    out_ref[...] = jnp.dot(z.astype(cd), ow_ref[...], preferred_element_type=f32) + ob_ref[...]


def make_params(key, state_dim, action_dim, hidden_dim, t_dim):
    """kaiming_normal_ (fan_in, gain=sqrt(2)) weights, zero biases.
    Weights stored as (in, out); master copies kept in float32."""
    dims = [
        ("tw1", t_dim, 2 * t_dim),
        ("tw2", 2 * t_dim, t_dim),
        ("mw1", action_dim + state_dim + t_dim, hidden_dim),
        ("mw2", hidden_dim, hidden_dim),
        ("mw3", hidden_dim, hidden_dim),
        ("ow", hidden_dim, action_dim),
    ]
    params = {}
    keys = jax.random.split(key, len(dims))
    for k, (name, fan_in, fan_out) in zip(keys, dims):
        std = math.sqrt(2.0 / fan_in)
        params[name] = jax.random.normal(k, (fan_in, fan_out), jnp.float32) * std
        params[name.replace("w", "b")] = jnp.zeros((1, fan_out), jnp.float32)
    return params


def sinusoidal_table(t_dim):
    half = t_dim // 2
    emb = math.log(10000.0) / (half - 1)
    return jnp.exp(jnp.arange(half, dtype=jnp.float32) * -emb)[None, :]   # (1, half)


def _round_up(x, m):
    return ((x + m - 1) // m) * m


def _choose_tile_b(B):
    """Batch tile: multiple of 8, capped at 512 rows (keeps double-buffered
    blocks far under v5e's 16 MiB / v7x's 32 MiB scoped VMEM defaults), and
    at least 2 grid steps when possible so the 'parallel' axis shards across
    v7x's two TensorCores."""
    if B <= 8:
        return B
    tile = None
    for tb in range(min(B, 512), 7, -1):
        if B % tb == 0 and tb % 8 == 0:
            tile = tb
            break
    if tile is None:
        tile = B                      # ragged batch: single step, still correct
    if tile == B and B >= 16 and (B // 2) % 8 == 0:
        tile = B // 2                 # ensure grid >= 2 (v7x megacore)
    return tile


def mlp_forward(a, t, state, params, emb, *, action_dim, tile_b=None,
                compute_dtype=jnp.bfloat16):
    B = a.shape[0]
    a_dim = a.shape[1]
    s_dim = state.shape[1]
    as_dim = a_dim + s_dim
    half = emb.shape[1]
    t_dim = params["tw2"].shape[1]
    hidden = params["mw2"].shape[0]
    out_pad = _round_up(max(action_dim, 128), 128)   # lane-dense output slab

    if tile_b is None:
        tile_b = _choose_tile_b(B)
    assert B % tile_b == 0, "batch must be divisible by tile_b"

    cd = compute_dtype

    # ---- pack [a | state | t] into one input slab (one DMA per grid step) ----
    x = jnp.concatenate(
        [a.astype(jnp.float32), state.astype(jnp.float32),
         t.reshape(B, 1).astype(jnp.float32)], axis=-1)               # (B, as_dim+1)

    # ---- pre-split / pad / cast weights in the wrapper ----
    tw1 = params["tw1"]
    tw1s = tw1[:half].astype(cd)                                      # sin half
    tw1c = tw1[half:].astype(cd)                                      # cos half
    tw2 = params["tw2"].astype(cd)
    mw1 = params["mw1"]
    mw1as = mw1[:as_dim].astype(cd)                                   # [a,state] rows
    mw1t = mw1[as_dim:].astype(cd)                                    # t_emb rows
    mw2 = params["mw2"].astype(cd)
    mw3 = params["mw3"].astype(cd)
    ow_p = jnp.zeros((hidden, out_pad), jnp.float32).at[:, :action_dim] \
              .set(params["ow"]).astype(cd)
    ob_p = jnp.zeros((1, out_pad), jnp.float32).at[:, :action_dim] \
              .set(params["ob"][0])
    tb1 = params["tb1"].astype(jnp.float32)
    tb2 = params["tb2"].astype(jnp.float32)
    mb1 = params["mb1"].astype(jnp.float32)
    mb2 = params["mb2"].astype(jnp.float32)
    mb3 = params["mb3"].astype(jnp.float32)

    weight_args = [tw1s, tw1c, tb1, tw2, tb2,
                   mw1as, mw1t, mb1, mw2, mb2, mw3, mb3,
                   ow_p, ob_p]

    def row_spec(ncols):
        return pl.BlockSpec((tile_b, ncols), lambda i: (i, 0))

    def full_spec(arr):
        return pl.BlockSpec(arr.shape, lambda i: (0, 0))

    in_specs = [row_spec(as_dim + 1), full_spec(emb)] + [full_spec(w) for w in weight_args]

    # ---- cost estimate so XLA can schedule around this tiny kernel ----
    flops = 2 * B * (half * 2 * t_dim + 2 * t_dim * t_dim
                     + as_dim * hidden + t_dim * hidden
                     + hidden * hidden + hidden * hidden + hidden * out_pad)
    transcendentals = B * (2 * half + 3 * (2 * t_dim + 3 * hidden))
    weight_bytes = sum(int(w.size) * w.dtype.itemsize for w in weight_args) \
                   + int(emb.size) * 4
    bytes_accessed = B * (as_dim + 1) * 4 + B * out_pad * 4 + weight_bytes

    out = pl.pallas_call(
        functools.partial(mlp_kernel, as_dim=as_dim, compute_dtype=cd),
        out_shape=jax.ShapeDtypeStruct((B, out_pad), jnp.float32),
        grid=(B // tile_b,),
        in_specs=in_specs,
        out_specs=pl.BlockSpec((tile_b, out_pad), lambda i: (i, 0)),
        compiler_params=pltpu.CompilerParams(dimension_semantics=("parallel",)),
        cost_estimate=pl.CostEstimate(flops=int(flops),
                                      transcendentals=int(transcendentals),
                                      bytes_accessed=int(bytes_accessed)),
    )(x, emb, *weight_args)

    return out[:, :action_dim]


def mlp_reference(a, t, state, params, emb, *, compute_dtype=jnp.float32):
    """Pure-JAX reference mirroring the PyTorch module; matmul operands cast to
    `compute_dtype` (f32 accumulation) so both f32 and bf16 kernel paths can be
    checked against a matched-precision reference."""
    cd = compute_dtype
    f32 = jnp.float32

    def lin(x, w, b):
        return jnp.dot(x.astype(cd), w.astype(cd), preferred_element_type=f32) + b

    t2d = t.reshape(-1, 1).astype(f32)
    arg = t2d * emb
    pe = jnp.concatenate([jnp.sin(arg), jnp.cos(arg)], axis=-1)
    h = _mish(lin(pe, params["tw1"], params["tb1"]))
    t_emb = lin(h, params["tw2"], params["tb2"])
    x = jnp.concatenate([a.astype(f32), state.astype(f32), t_emb], axis=-1)
    x = _mish(lin(x, params["mw1"], params["mb1"]))
    x = _mish(lin(x, params["mw2"], params["mb2"]))
    x = _mish(lin(x, params["mw3"], params["mb3"]))
    return lin(x, params["ow"], params["ob"])


if __name__ == "__main__":
    state_dim, action_dim, hidden_dim, t_dim = 16, 8, 32, 16
    batch = 8

    key = jax.random.PRNGKey(0)
    k_a, k_s, k_t, k_p = jax.random.split(key, 4)

    a = jax.random.normal(k_a, (batch, action_dim), jnp.float32)
    state = jax.random.normal(k_s, (batch, state_dim), jnp.float32)
    t = jax.random.uniform(k_t, (batch,), jnp.float32)    # per-sample diffusion timestep

    params = make_params(k_p, state_dim, action_dim, hidden_dim, t_dim)
    emb = sinusoidal_table(t_dim)

    # --- f32 path: strict check against the f32 reference (module semantics) ---
    out_f32 = mlp_forward(a, t, state, params, emb, action_dim=action_dim,
                          compute_dtype=jnp.float32)
    out_f32 = jax.block_until_ready(out_f32)
    ref_f32 = mlp_reference(a, t, state, params, emb, compute_dtype=jnp.float32)
    assert out_f32.shape == (batch, action_dim)
    assert jnp.allclose(out_f32, ref_f32, atol=1e-4, rtol=1e-4), "f32 mismatch vs reference"

    # --- bf16 matmul path (default, MXU-native): check vs matched-precision ref ---
    out_bf16 = mlp_forward(a, t, state, params, emb, action_dim=action_dim)
    out_bf16 = jax.block_until_ready(out_bf16)
    ref_bf16 = mlp_reference(a, t, state, params, emb, compute_dtype=jnp.bfloat16)
    assert out_bf16.shape == (batch, action_dim)
    assert jnp.allclose(out_bf16, ref_bf16, atol=2e-3, rtol=2e-3), "bf16 mismatch vs reference"

    print("KERNEL_OK")
</pallas_src>

<mosaic_0001>
module attributes {stable_mosaic.version = 11 : i64} {
  func.func @mlp_kernel(%arg0: i32, %arg1: memref<8x25xf32, #tpu.memory_space<vmem>>, %arg2: memref<1x8xf32, #tpu.memory_space<vmem>>, %arg3: memref<8x32xf32, #tpu.memory_space<vmem>>, %arg4: memref<8x32xf32, #tpu.memory_space<vmem>>, %arg5: memref<1x32xf32, #tpu.memory_space<vmem>>, %arg6: memref<32x16xf32, #tpu.memory_space<vmem>>, %arg7: memref<1x16xf32, #tpu.memory_space<vmem>>, %arg8: memref<24x32xf32, #tpu.memory_space<vmem>>, %arg9: memref<16x32xf32, #tpu.memory_space<vmem>>, %arg10: memref<1x32xf32, #tpu.memory_space<vmem>>, %arg11: memref<32x32xf32, #tpu.memory_space<vmem>>, %arg12: memref<1x32xf32, #tpu.memory_space<vmem>>, %arg13: memref<32x32xf32, #tpu.memory_space<vmem>>, %arg14: memref<1x32xf32, #tpu.memory_space<vmem>>, %arg15: memref<32x128xf32, #tpu.memory_space<vmem>>, %arg16: memref<1x128xf32, #tpu.memory_space<vmem>>, %arg17: memref<8x128xf32, #tpu.memory_space<vmem>>) attributes {dimension_semantics = [#tpu.dimension_semantics<parallel>], iteration_bounds = array<i64: 1>, scalar_prefetch = 0 : i64, scratch_operands = 0 : i64, tpu.core_type = #tpu.core_type<tc>, window_params = [{transform_indices = @transform_0, window_bounds = array<i64: 8, 25>}, {pipeline_mode = #tpu.pipeline_mode<synchronous>, transform_indices = @transform_1, window_bounds = array<i64: 1, 8>}, {pipeline_mode = #tpu.pipeline_mode<synchronous>, transform_indices = @transform_2, window_bounds = array<i64: 8, 32>}, {pipeline_mode = #tpu.pipeline_mode<synchronous>, transform_indices = @transform_3, window_bounds = array<i64: 8, 32>}, {pipeline_mode = #tpu.pipeline_mode<synchronous>, transform_indices = @transform_4, window_bounds = array<i64: 1, 32>}, {pipeline_mode = #tpu.pipeline_mode<synchronous>, transform_indices = @transform_5, window_bounds = array<i64: 32, 16>}, {pipeline_mode = #tpu.pipeline_mode<synchronous>, transform_indices = @transform_6, window_bounds = array<i64: 1, 16>}, {pipeline_mode = #tpu.pipeline_mode<synchronous>, transform_indices = @transform_7, window_bounds = array<i64: 24, 32>}, {pipeline_mode = #tpu.pipeline_mode<synchronous>, transform_indices = @transform_8, window_bounds = array<i64: 16, 32>}, {pipeline_mode = #tpu.pipeline_mode<synchronous>, transform_indices = @transform_9, window_bounds = array<i64: 1, 32>}, {pipeline_mode = #tpu.pipeline_mode<synchronous>, transform_indices = @transform_10, window_bounds = array<i64: 32, 32>}, {pipeline_mode = #tpu.pipeline_mode<synchronous>, transform_indices = @transform_11, window_bounds = array<i64: 1, 32>}, {pipeline_mode = #tpu.pipeline_mode<synchronous>, transform_indices = @transform_12, window_bounds = array<i64: 32, 32>}, {pipeline_mode = #tpu.pipeline_mode<synchronous>, transform_indices = @transform_13, window_bounds = array<i64: 1, 32>}, {pipeline_mode = #tpu.pipeline_mode<synchronous>, transform_indices = @transform_14, window_bounds = array<i64: 32, 128>}, {pipeline_mode = #tpu.pipeline_mode<synchronous>, transform_indices = @transform_15, window_bounds = array<i64: 1, 128>}, {transform_indices = @transform_16, window_bounds = array<i64: 8, 128>}]} {
    %c0 = arith.constant 0 : index
    %c0_0 = arith.constant 0 : index
    %0 = vector.load %arg1[%c0, %c0_0] : memref<8x25xf32, #tpu.memory_space<vmem>>, vector<8x25xf32>
    %1 = vector.extract_strided_slice %0 {offsets = [0, 0], sizes = [8, 24], strides = [1, 1]} : vector<8x25xf32> to vector<8x24xf32>
    %2 = vector.extract_strided_slice %0 {offsets = [0, 24], sizes = [8, 1], strides = [1, 1]} : vector<8x25xf32> to vector<8x1xf32>
    %c0_1 = arith.constant 0 : index
    %c0_2 = arith.constant 0 : index
    %3 = vector.load %arg2[%c0_1, %c0_2] : memref<1x8xf32, #tpu.memory_space<vmem>>, vector<1x8xf32>
    %4 = vector.broadcast %2 : vector<8x1xf32> to vector<8x8xf32>
    %5 = vector.broadcast %3 : vector<1x8xf32> to vector<8x8xf32>
    %6 = arith.mulf %4, %5 : vector<8x8xf32>
    %7 = math.sin %6 : vector<8x8xf32>
    %8 = math.cos %6 : vector<8x8xf32>
    %c0_3 = arith.constant 0 : index
    %c0_4 = arith.constant 0 : index
    %9 = vector.load %arg3[%c0_3, %c0_4] : memref<8x32xf32, #tpu.memory_space<vmem>>, vector<8x32xf32>
    %cst = arith.constant dense<0.000000e+00> : vector<8x32xf32>
    %10 = tpu.matmul %7, %9, %cst {dimension_numbers = #tpu.dot_dimension_numbers<[1], [0], [0], [1], [0, 0, 1, 1], [], []>} : vector<8x8xf32>, vector<8x32xf32>, vector<8x32xf32> -> vector<8x32xf32>
    %c0_5 = arith.constant 0 : index
    %c0_6 = arith.constant 0 : index
    %11 = vector.load %arg4[%c0_5, %c0_6] : memref<8x32xf32, #tpu.memory_space<vmem>>, vector<8x32xf32>
    %cst_7 = arith.constant dense<0.000000e+00> : vector<8x32xf32>
    %12 = tpu.matmul %8, %11, %cst_7 {dimension_numbers = #tpu.dot_dimension_numbers<[1], [0], [0], [1], [0, 0, 1, 1], [], []>} : vector<8x8xf32>, vector<8x32xf32>, vector<8x32xf32> -> vector<8x32xf32>
    %13 = arith.addf %10, %12 : vector<8x32xf32>
    %c0_8 = arith.constant 0 : index
    %c0_9 = arith.constant 0 : index
    %14 = vector.load %arg5[%c0_8, %c0_9] : memref<1x32xf32, #tpu.memory_space<vmem>>, vector<1x32xf32>
    %15 = vector.broadcast %14 : vector<1x32xf32> to vector<8x32xf32>
    %16 = arith.addf %13, %15 : vector<8x32xf32>
    %cst_10 = arith.constant 0.000000e+00 : f32
    %17 = vector.broadcast %cst_10 : f32 to vector<8x32xf32>
    %18 = arith.maximumf %16, %17 : vector<8x32xf32>
    %19 = vector.broadcast %cst_10 : f32 to vector<8x32xf32>
    %20 = arith.subf %16, %19 : vector<8x32xf32>
    %21 = arith.cmpf one, %20, %20 : vector<8x32xf32>
    %22 = vector.broadcast %cst_10 : f32 to vector<8x32xf32>
    %23 = arith.addf %16, %22 : vector<8x32xf32>
    %24 = math.absf %20 : vector<8x32xf32>
    %cst_11 = arith.constant 0.000000e+00 : f32
    %25 = vector.broadcast %cst_11 : f32 to vector<8x32xf32>
    %26 = arith.subf %25, %24 : vector<8x32xf32>
    %27 = math.exp %26 : vector<8x32xf32>
    %28 = math.log1p %27 : vector<8x32xf32>
    %29 = arith.addf %18, %28 : vector<8x32xf32>
    %30 = arith.select %21, %23, %29 : vector<8x32xi1>, vector<8x32xf32>
    %31 = math.tanh %30 : vector<8x32xf32>
    %32 = arith.mulf %16, %31 : vector<8x32xf32>
    %c0_12 = arith.constant 0 : index
    %c0_13 = arith.constant 0 : index
    %33 = vector.load %arg6[%c0_12, %c0_13] : memref<32x16xf32, #tpu.memory_space<vmem>>, vector<32x16xf32>
    %cst_14 = arith.constant dense<0.000000e+00> : vector<8x16xf32>
    %34 = tpu.matmul %32, %33, %cst_14 {dimension_numbers = #tpu.dot_dimension_numbers<[1], [0], [0], [1], [0, 0, 1, 1], [], []>} : vector<8x32xf32>, vector<32x16xf32>, vector<8x16xf32> -> vector<8x16xf32>
    %c0_15 = arith.constant 0 : index
    %c0_16 = arith.constant 0 : index
    %35 = vector.load %arg7[%c0_15, %c0_16] : memref<1x16xf32, #tpu.memory_space<vmem>>, vector<1x16xf32>
    %36 = vector.broadcast %35 : vector<1x16xf32> to vector<8x16xf32>
    %37 = arith.addf %34, %36 : vector<8x16xf32>
    %c0_17 = arith.constant 0 : index
    %c0_18 = arith.constant 0 : index
    %38 = vector.load %arg8[%c0_17, %c0_18] : memref<24x32xf32, #tpu.memory_space<vmem>>, vector<24x32xf32>
    %cst_19 = arith.constant dense<0.000000e+00> : vector<8x32xf32>
    %39 = tpu.matmul %1, %38, %cst_19 {dimension_numbers = #tpu.dot_dimension_numbers<[1], [0], [0], [1], [0, 0, 1, 1], [], []>} : vector<8x24xf32>, vector<24x32xf32>, vector<8x32xf32> -> vector<8x32xf32>
    %c0_20 = arith.constant 0 : index
    %c0_21 = arith.constant 0 : index
    %40 = vector.load %arg9[%c0_20, %c0_21] : memref<16x32xf32, #tpu.memory_space<vmem>>, vector<16x32xf32>
    %cst_22 = arith.constant dense<0.000000e+00> : vector<8x32xf32>
    %41 = tpu.matmul %37, %40, %cst_22 {dimension_numbers = #tpu.dot_dimension_numbers<[1], [0], [0], [1], [0, 0, 1, 1], [], []>} : vector<8x16xf32>, vector<16x32xf32>, vector<8x32xf32> -> vector<8x32xf32>
    %42 = arith.addf %39, %41 : vector<8x32xf32>
    %c0_23 = arith.constant 0 : index
    %c0_24 = arith.constant 0 : index
    %43 = vector.load %arg10[%c0_23, %c0_24] : memref<1x32xf32, #tpu.memory_space<vmem>>, vector<1x32xf32>
    %44 = vector.broadcast %43 : vector<1x32xf32> to vector<8x32xf32>
    %45 = arith.addf %42, %44 : vector<8x32xf32>
    %cst_25 = arith.constant 0.000000e+00 : f32
    %46 = vector.broadcast %cst_25 : f32 to vector<8x32xf32>
    %47 = arith.maximumf %45, %46 : vector<8x32xf32>
    %48 = vector.broadcast %cst_25 : f32 to vector<8x32xf32>
    %49 = arith.subf %45, %48 : vector<8x32xf32>
    %50 = arith.cmpf one, %49, %49 : vector<8x32xf32>
    %51 = vector.broadcast %cst_25 : f32 to vector<8x32xf32>
    %52 = arith.addf %45, %51 : vector<8x32xf32>
    %53 = math.absf %49 : vector<8x32xf32>
    %cst_26 = arith.constant 0.000000e+00 : f32
    %54 = vector.broadcast %cst_26 : f32 to vector<8x32xf32>
    %55 = arith.subf %54, %53 : vector<8x32xf32>
    %56 = math.exp %55 : vector<8x32xf32>
    %57 = math.log1p %56 : vector<8x32xf32>
    %58 = arith.addf %47, %57 : vector<8x32xf32>
    %59 = arith.select %50, %52, %58 : vector<8x32xi1>, vector<8x32xf32>
    %60 = math.tanh %59 : vector<8x32xf32>
    %61 = arith.mulf %45, %60 : vector<8x32xf32>
    %c0_27 = arith.constant 0 : index
    %c0_28 = arith.constant 0 : index
    %62 = vector.load %arg11[%c0_27, %c0_28] : memref<32x32xf32, #tpu.memory_space<vmem>>, vector<32x32xf32>
    %cst_29 = arith.constant dense<0.000000e+00> : vector<8x32xf32>
    %63 = tpu.matmul %61, %62, %cst_29 {dimension_numbers = #tpu.dot_dimension_numbers<[1], [0], [0], [1], [0, 0, 1, 1], [], []>} : vector<8x32xf32>, vector<32x32xf32>, vector<8x32xf32> -> vector<8x32xf32>
    %c0_30 = arith.constant 0 : index
    %c0_31 = arith.constant 0 : index
    %64 = vector.load %arg12[%c0_30, %c0_31] : memref<1x32xf32, #tpu.memory_space<vmem>>, vector<1x32xf32>
    %65 = vector.broadcast %64 : vector<1x32xf32> to vector<8x32xf32>
    %66 = arith.addf %63, %65 : vector<8x32xf32>
    %cst_32 = arith.constant 0.000000e+00 : f32
    %67 = vector.broadcast %cst_32 : f32 to vector<8x32xf32>
    %68 = arith.maximumf %66, %67 : vector<8x32xf32>
    %69 = vector.broadcast %cst_32 : f32 to vector<8x32xf32>
    %70 = arith.subf %66, %69 : vector<8x32xf32>
    %71 = arith.cmpf one, %70, %70 : vector<8x32xf32>
    %72 = vector.broadcast %cst_32 : f32 to vector<8x32xf32>
    %73 = arith.addf %66, %72 : vector<8x32xf32>
    %74 = math.absf %70 : vector<8x32xf32>
    %cst_33 = arith.constant 0.000000e+00 : f32
    %75 = vector.broadcast %cst_33 : f32 to vector<8x32xf32>
    %76 = arith.subf %75, %74 : vector<8x32xf32>
    %77 = math.exp %76 : vector<8x32xf32>
    %78 = math.log1p %77 : vector<8x32xf32>
    %79 = arith.addf %68, %78 : vector<8x32xf32>
    %80 = arith.select %71, %73, %79 : vector<8x32xi1>, vector<8x32xf32>
    %81 = math.tanh %80 : vector<8x32xf32>
    %82 = arith.mulf %66, %81 : vector<8x32xf32>
    %c0_34 = arith.constant 0 : index
    %c0_35 = arith.constant 0 : index
    %83 = vector.load %arg13[%c0_34, %c0_35] : memref<32x32xf32, #tpu.memory_space<vmem>>, vector<32x32xf32>
    %cst_36 = arith.constant dense<0.000000e+00> : vector<8x32xf32>
    %84 = tpu.matmul %82, %83, %cst_36 {dimension_numbers = #tpu.dot_dimension_numbers<[1], [0], [0], [1], [0, 0, 1, 1], [], []>} : vector<8x32xf32>, vector<32x32xf32>, vector<8x32xf32> -> vector<8x32xf32>
    %c0_37 = arith.constant 0 : index
    %c0_38 = arith.constant 0 : index
    %85 = vector.load %arg14[%c0_37, %c0_38] : memref<1x32xf32, #tpu.memory_space<vmem>>, vector<1x32xf32>
    %86 = vector.broadcast %85 : vector<1x32xf32> to vector<8x32xf32>
    %87 = arith.addf %84, %86 : vector<8x32xf32>
    %cst_39 = arith.constant 0.000000e+00 : f32
    %88 = vector.broadcast %cst_39 : f32 to vector<8x32xf32>
    %89 = arith.maximumf %87, %88 : vector<8x32xf32>
    %90 = vector.broadcast %cst_39 : f32 to vector<8x32xf32>
    %91 = arith.subf %87, %90 : vector<8x32xf32>
    %92 = arith.cmpf one, %91, %91 : vector<8x32xf32>
    %93 = vector.broadcast %cst_39 : f32 to vector<8x32xf32>
    %94 = arith.addf %87, %93 : vector<8x32xf32>
    %95 = math.absf %91 : vector<8x32xf32>
    %cst_40 = arith.constant 0.000000e+00 : f32
    %96 = vector.broadcast %cst_40 : f32 to vector<8x32xf32>
    %97 = arith.subf %96, %95 : vector<8x32xf32>
    %98 = math.exp %97 : vector<8x32xf32>
    %99 = math.log1p %98 : vector<8x32xf32>
    %100 = arith.addf %89, %99 : vector<8x32xf32>
    %101 = arith.select %92, %94, %100 : vector<8x32xi1>, vector<8x32xf32>
    %102 = math.tanh %101 : vector<8x32xf32>
    %103 = arith.mulf %87, %102 : vector<8x32xf32>
    %c0_41 = arith.constant 0 : index
    %c0_42 = arith.constant 0 : index
    %104 = vector.load %arg15[%c0_41, %c0_42] : memref<32x128xf32, #tpu.memory_space<vmem>>, vector<32x128xf32>
    %cst_43 = arith.constant dense<0.000000e+00> : vector<8x128xf32>
    %105 = tpu.matmul %103, %104, %cst_43 {dimension_numbers = #tpu.dot_dimension_numbers<[1], [0], [0], [1], [0, 0, 1, 1], [], []>} : vector<8x32xf32>, vector<32x128xf32>, vector<8x128xf32> -> vector<8x128xf32>
    %c0_44 = arith.constant 0 : index
    %c0_45 = arith.constant 0 : index
    %106 = vector.load %arg16[%c0_44, %c0_45] : memref<1x128xf32, #tpu.memory_space<vmem>>, vector<1x128xf32>
    %107 = vector.broadcast %106 : vector<1x128xf32> to vector<8x128xf32>
    %108 = arith.addf %105, %107 : vector<8x128xf32>
    %c0_46 = arith.constant 0 : index
    %c0_47 = arith.constant 0 : index
    %109 = vector.load %arg17[%c0_46, %c0_47] : memref<8x128xf32, #tpu.memory_space<vmem>>, vector<8x128xf32>
    tpu.vector_store %arg17[%c0_46, %c0_47], %108 {strides = array<i32>} : memref<8x128xf32, #tpu.memory_space<vmem>>, vector<8x128xf32>,
    return
  }
  func.func @transform_0(%arg0: i32) -> (i32, i32) {
    %c0_i32 = arith.constant 0 : i32
    %c0_i32_0 = arith.constant 0 : i32
    return %arg0, %c0_i32 : i32, i32
  }
  func.func @transform_1(%arg0: i32) -> (i32, i32) {
    %c0_i32 = arith.constant 0 : i32
    %c0_i32_0 = arith.constant 0 : i32
    %c0_i32_1 = arith.constant 0 : i32
    return %c0_i32, %c0_i32_0 : i32, i32
  }
  func.func @transform_2(%arg0: i32) -> (i32, i32) {
    %c0_i32 = arith.constant 0 : i32
    %c0_i32_0 = arith.constant 0 : i32
    %c0_i32_1 = arith.constant 0 : i32
    return %c0_i32, %c0_i32_0 : i32, i32
  }
  func.func @transform_3(%arg0: i32) -> (i32, i32) {
    %c0_i32 = arith.constant 0 : i32
    %c0_i32_0 = arith.constant 0 : i32
    %c0_i32_1 = arith.constant 0 : i32
    return %c0_i32, %c0_i32_0 : i32, i32
  }
  func.func @transform_4(%arg0: i32) -> (i32, i32) {
    %c0_i32 = arith.constant 0 : i32
    %c0_i32_0 = arith.constant 0 : i32
    %c0_i32_1 = arith.constant 0 : i32
    return %c0_i32, %c0_i32_0 : i32, i32
  }
  func.func @transform_5(%arg0: i32) -> (i32, i32) {
    %c0_i32 = arith.constant 0 : i32
    %c0_i32_0 = arith.constant 0 : i32
    %c0_i32_1 = arith.constant 0 : i32
    return %c0_i32, %c0_i32_0 : i32, i32
  }
  func.func @transform_6(%arg0: i32) -> (i32, i32) {
    %c0_i32 = arith.constant 0 : i32
    %c0_i32_0 = arith.constant 0 : i32
    %c0_i32_1 = arith.constant 0 : i32
    return %c0_i32, %c0_i32_0 : i32, i32
  }
  func.func @transform_7(%arg0: i32) -> (i32, i32) {
    %c0_i32 = arith.constant 0 : i32
    %c0_i32_0 = arith.constant 0 : i32
    %c0_i32_1 = arith.constant 0 : i32
    return %c0_i32, %c0_i32_0 : i32, i32
  }
  func.func @transform_8(%arg0: i32) -> (i32, i32) {
    %c0_i32 = arith.constant 0 : i32
    %c0_i32_0 = arith.constant 0 : i32
    %c0_i32_1 = arith.constant 0 : i32
    return %c0_i32, %c0_i32_0 : i32, i32
  }
  func.func @transform_9(%arg0: i32) -> (i32, i32) {
    %c0_i32 = arith.constant 0 : i32
    %c0_i32_0 = arith.constant 0 : i32
    %c0_i32_1 = arith.constant 0 : i32
    return %c0_i32, %c0_i32_0 : i32, i32
  }
  func.func @transform_10(%arg0: i32) -> (i32, i32) {
    %c0_i32 = arith.constant 0 : i32
    %c0_i32_0 = arith.constant 0 : i32
    %c0_i32_1 = arith.constant 0 : i32
    return %c0_i32, %c0_i32_0 : i32, i32
  }
  func.func @transform_11(%arg0: i32) -> (i32, i32) {
    %c0_i32 = arith.constant 0 : i32
    %c0_i32_0 = arith.constant 0 : i32
    %c0_i32_1 = arith.constant 0 : i32
    return %c0_i32, %c0_i32_0 : i32, i32
  }
  func.func @transform_12(%arg0: i32) -> (i32, i32) {
    %c0_i32 = arith.constant 0 : i32
    %c0_i32_0 = arith.constant 0 : i32
    %c0_i32_1 = arith.constant 0 : i32
    return %c0_i32, %c0_i32_0 : i32, i32
  }
  func.func @transform_13(%arg0: i32) -> (i32, i32) {
    %c0_i32 = arith.constant 0 : i32
    %c0_i32_0 = arith.constant 0 : i32
    %c0_i32_1 = arith.constant 0 : i32
    return %c0_i32, %c0_i32_0 : i32, i32
  }
  func.func @transform_14(%arg0: i32) -> (i32, i32) {
    %c0_i32 = arith.constant 0 : i32
    %c0_i32_0 = arith.constant 0 : i32
    %c0_i32_1 = arith.constant 0 : i32
    return %c0_i32, %c0_i32_0 : i32, i32
  }
  func.func @transform_15(%arg0: i32) -> (i32, i32) {
    %c0_i32 = arith.constant 0 : i32
    %c0_i32_0 = arith.constant 0 : i32
    %c0_i32_1 = arith.constant 0 : i32
    return %c0_i32, %c0_i32_0 : i32, i32
  }
  func.func @transform_16(%arg0: i32) -> (i32, i32) {
    %c0_i32 = arith.constant 0 : i32
    %c0_i32_0 = arith.constant 0 : i32
    return %arg0, %c0_i32 : i32, i32
  }
}

</mosaic_0001>

<llo_original>
// kernel: tpu_custom_call.1
$region0: #{tpu_custom_call.1}
  #allocation0 [shape = 'u32[]', space=smem, size = 0x4, offset = 0x4, fixed_abs, tag = 'smem constant byte address 0x4 - core index']
  #allocation1 [shape = 'u32[144,128]{1,0:T(1,128)}', space=vmem, size = 0x12000, scoped, tag = 'internal scratch']
  %s0 = inlined_call_operand.hbm [shape: f32[8,25], index: 0, kind: input, shape index: {}]
  %s1 = inlined_call_operand.hbm [shape: f32[1,8], index: 1, kind: input, shape index: {}]
  %s2 = inlined_call_operand.hbm [shape: f32[8,32], index: 2, kind: input, shape index: {}]
  %s3 = inlined_call_operand.hbm [shape: f32[8,32], index: 3, kind: input, shape index: {}]
  %s4 = inlined_call_operand.hbm [shape: f32[1,32], index: 4, kind: input, shape index: {}]
  %s5 = inlined_call_operand.vmem [shape: f32[32,16], index: 5, kind: input, shape index: {}]
  %s6 = inlined_call_operand.hbm [shape: f32[1,16], index: 6, kind: input, shape index: {}]
  %s7 = inlined_call_operand.hbm [shape: f32[24,32], index: 7, kind: input, shape index: {}]
  %s8 = inlined_call_operand.hbm [shape: f32[16,32], index: 8, kind: input, shape index: {}]
  %s9 = inlined_call_operand.hbm [shape: f32[1,32], index: 9, kind: input, shape index: {}]
  %s10 = inlined_call_operand.vmem [shape: f32[32,32], index: 10, kind: input, shape index: {}]
  %s11 = inlined_call_operand.vmem [shape: f32[1,32], index: 11, kind: input, shape index: {}]
  %s12 = inlined_call_operand.vmem [shape: f32[32,32], index: 12, kind: input, shape index: {}]
  %s13 = inlined_call_operand.vmem [shape: f32[1,32], index: 13, kind: input, shape index: {}]
  %s14 = inlined_call_operand.hbm [shape: f32[32,128], index: 14, kind: input, shape index: {}]
  %s15 = inlined_call_operand.vmem [shape: f32[1,128], index: 15, kind: input, shape index: {}]
  %s16 = inlined_call_operand.hbm [shape: f32[8,128], index: 16, kind: output, shape index: {}]
  %s17 = sld [smem:[#allocation0]]
  $region114: #{tpu_custom_call.1} parent=0
    _
  %s19 = ssub.s32 1, %s17
  %s20 = scalar_select 0, %s19, %s17
  $region1: #{tpu_custom_call.1} parent=0
    #allocation2 [shape = 'u8[4096]{0}', space=vmem, size = 0x1000, scoped, tag = 'input window, operand 0, single buffered']
    #allocation3 [shape = 's32[1]{0}', space=sflag, size = 0x4, scoped, tag = 'scoped memory for tpu_custom_call.1']
    #allocation4 [shape = 's32[1]{0}', space=sflag, size = 0x4, scoped, tag = 'scoped memory for tpu_custom_call.1']
    #allocation5 [shape = 'u8[512]{0}', space=vmem, size = 0x400, scoped, tag = 'input window, operand 1, single buffered']
    #allocation6 [shape = 's32[1]{0}', space=sflag, size = 0x4, scoped, tag = 'scoped memory for tpu_custom_call.1']
    #allocation7 [shape = 'u8[4096]{0}', space=vmem, size = 0x1000, scoped, tag = 'input window, operand 2, single buffered']
    #allocation8 [shape = 'u8[4096]{0}', space=vmem, size = 0x1000, scoped, tag = 'input window, operand 3, single buffered']
    #allocation9 [shape = 's32[1]{0}', space=sflag, size = 0x4, scoped, tag = 'scoped memory for tpu_custom_call.1']
    #allocation10 [shape = 'u8[512]{0}', space=vmem, size = 0x400, scoped, tag = 'input window, operand 4, single buffered']
    #allocation11 [shape = 'u8[512]{0}', space=vmem, size = 0x400, scoped, tag = 'input window, operand 6, single buffered']
    #allocation12 [shape = 's32[1]{0}', space=sflag, size = 0x4, scoped, tag = 'scoped memory for tpu_custom_call.1']
    #allocation13 [shape = 'u8[12288]{0}', space=vmem, size = 0x3000, scoped, tag = 'input window, operand 7, single buffered']
    #allocation14 [shape = 'u8[8192]{0}', space=vmem, size = 0x2000, scoped, tag = 'input window, operand 8, single buffered']
    #allocation15 [shape = 's32[1]{0}', space=sflag, size = 0x4, scoped, tag = 'scoped memory for tpu_custom_call.1']
    #allocation16 [shape = 'u8[512]{0}', space=vmem, size = 0x400, scoped, tag = 'input window, operand 9, single buffered']
    #allocation17 [shape = 'u8[16384]{0}', space=vmem, size = 0x4000, scoped, tag = 'input window, operand 14, single buffered']
    #allocation18 [shape = 's32[1]{0}', space=sflag, size = 0x4, scoped, tag = 'scoped memory for tpu_custom_call.1']
    #allocation19 [shape = 'u8[4096]{0}', space=vmem, size = 0x1000, scoped, tag = 'output window, operand 0, single buffered']
    %21 = vsyncpa [#allocation3], 0
    %22 = vsyncpa [#allocation6], 0
    %23 = vsyncpa [#allocation9], 0
    %24 = vsyncpa [#allocation12], 0
    %25 = vsyncpa [#allocation15], 0
    %26 = vsyncpa [#allocation18], 0
    %27 = vsyncpa [#allocation4], 0
    // Predicated region
    $region2: #{tpu_custom_call.1} parent=1 // pred_check
      _
    $region3: #{tpu_custom_call.1} parent=1 // pred_check_branch
      %29 = sbr.rel (0) target = $region5
    $region4: #{tpu_custom_call.1} parent=1 // pred_region
      %s31 = ssub.s32 128, 128
      %32 = vsyncadd [#allocation3], %s31
      %s34 = sshll.u32 [#allocation2], 4
      %s35 = int_to_ptr.vmem [resolvable:$true] %s34
      %37 = dma.hbm_to_vmem [thread:$0]  %s0, 128, %s35, [#allocation3]
    $region5: #{tpu_custom_call.1} parent=1 // pred_fallthru
      _
    // Predicated region
    $region6: #{tpu_custom_call.1} parent=1 // pred_check
      _
    $region7: #{tpu_custom_call.1} parent=1 // pred_check_branch
      %39 = sbr.rel (0) target = $region9
    $region8: #{tpu_custom_call.1} parent=1 // pred_region
      %s41 = ssub.s32 16, 16
      %42 = vsyncadd [#allocation6], %s41
      %s44 = sshll.u32 [#allocation5], 4
      %s45 = int_to_ptr.vmem [resolvable:$true] %s44
      %47 = dma.hbm_to_vmem [thread:$0]  %s1, 16, %s45, [#allocation6]
    $region9: #{tpu_custom_call.1} parent=1 // pred_fallthru
      _
    // Predicated region
    $region10: #{tpu_custom_call.1} parent=1 // pred_check
      _
    $region11: #{tpu_custom_call.1} parent=1 // pred_check_branch
      %49 = sbr.rel (0) target = $region13
    $region12: #{tpu_custom_call.1} parent=1 // pred_region
      %s51 = ssub.s32 128, 128
      %52 = vsyncadd [#allocation6], %s51
      %s54 = sshll.u32 [#allocation7], 4
      %s55 = int_to_ptr.vmem [resolvable:$true] %s54
      %57 = dma.hbm_to_vmem [thread:$0]  %s2, 128, %s55, [#allocation6]
    $region13: #{tpu_custom_call.1} parent=1 // pred_fallthru
      _
    // Predicated region
    $region14: #{tpu_custom_call.1} parent=1 // pred_check
      _
    $region15: #{tpu_custom_call.1} parent=1 // pred_check_branch
      %59 = sbr.rel (0) target = $region17
    $region16: #{tpu_custom_call.1} parent=1 // pred_region
      %s61 = ssub.s32 128, 128
      %62 = vsyncadd [#allocation9], %s61
      %s64 = sshll.u32 [#allocation8], 4
      %s65 = int_to_ptr.vmem [resolvable:$true] %s64
      %67 = dma.hbm_to_vmem [thread:$0]  %s3, 128, %s65, [#allocation9]
    $region17: #{tpu_custom_call.1} parent=1 // pred_fallthru
      _
    // Predicated region
    $region18: #{tpu_custom_call.1} parent=1 // pred_check
      _
    $region19: #{tpu_custom_call.1} parent=1 // pred_check_branch
      %69 = sbr.rel (0) target = $region21
    $region20: #{tpu_custom_call.1} parent=1 // pred_region
      %s71 = ssub.s32 16, 16
      %72 = vsyncadd [#allocation9], %s71
      %s74 = sshll.u32 [#allocation10], 4
      %s75 = int_to_ptr.vmem [resolvable:$true] %s74
      %77 = dma.hbm_to_vmem [thread:$0]  %s4, 16, %s75, [#allocation9]
    $region21: #{tpu_custom_call.1} parent=1 // pred_fallthru
      _
    // Predicated region
    $region22: #{tpu_custom_call.1} parent=1 // pred_check
      _
    $region23: #{tpu_custom_call.1} parent=1 // pred_check_branch
      %79 = sbr.rel (0) target = $region25
    $region24: #{tpu_custom_call.1} parent=1 // pred_region
      _
    $region25: #{tpu_custom_call.1} parent=1 // pred_fallthru
      _
    // Predicated region
    $region26: #{tpu_custom_call.1} parent=1 // pred_check
      _
    $region27: #{tpu_custom_call.1} parent=1 // pred_check_branch
      %81 = sbr.rel (0) target = $region29
    $region28: #{tpu_custom_call.1} parent=1 // pred_region
      %s83 = ssub.s32 16, 16
      %84 = vsyncadd [#allocation12], %s83
      %s86 = sshll.u32 [#allocation11], 4
      %s87 = int_to_ptr.vmem [resolvable:$true] %s86
      %89 = dma.hbm_to_vmem [thread:$0]  %s6, 16, %s87, [#allocation12]
    $region29: #{tpu_custom_call.1} parent=1 // pred_fallthru
      _
    // Predicated region
    $region30: #{tpu_custom_call.1} parent=1 // pred_check
      _
    $region31: #{tpu_custom_call.1} parent=1 // pred_check_branch
      %91 = sbr.rel (0) target = $region33
    $region32: #{tpu_custom_call.1} parent=1 // pred_region
      %s93 = ssub.s32 384, 384
      %94 = vsyncadd [#allocation12], %s93
      %s95 = sshll.u32 [#allocation13], 4
      %s96 = int_to_ptr.vmem [resolvable:$true] %s95
      %101 = dma.hbm_to_vmem [thread:$0]  %s7, 384, %s96, [#allocation12], 128, 128, 8
    $region33: #{tpu_custom_call.1} parent=1 // pred_fallthru
      _
    // Predicated region
    $region34: #{tpu_custom_call.1} parent=1 // pred_check
      _
    $region35: #{tpu_custom_call.1} parent=1 // pred_check_branch
      %103 = sbr.rel (0) target = $region37
    $region36: #{tpu_custom_call.1} parent=1 // pred_region
      %s105 = ssub.s32 256, 256
      %106 = vsyncadd [#allocation15], %s105
      %s107 = sshll.u32 [#allocation14], 4
      %s108 = int_to_ptr.vmem [resolvable:$true] %s107
      %113 = dma.hbm_to_vmem [thread:$0]  %s8, 256, %s108, [#allocation15], 128, 128, 8
    $region37: #{tpu_custom_call.1} parent=1 // pred_fallthru
      _
    // Predicated region
    $region38: #{tpu_custom_call.1} parent=1 // pred_check
      _
    $region39: #{tpu_custom_call.1} parent=1 // pred_check_branch
      %115 = sbr.rel (0) target = $region41
    $region40: #{tpu_custom_call.1} parent=1 // pred_region
      %s117 = ssub.s32 16, 16
      %118 = vsyncadd [#allocation15], %s117
      %s120 = sshll.u32 [#allocation16], 4
      %s121 = int_to_ptr.vmem [resolvable:$true] %s120
      %123 = dma.hbm_to_vmem [thread:$0]  %s9, 16, %s121, [#allocation15]
    $region41: #{tpu_custom_call.1} parent=1 // pred_fallthru
      _
    // Predicated region
    $region42: #{tpu_custom_call.1} parent=1 // pred_check
      _
    $region43: #{tpu_custom_call.1} parent=1 // pred_check_branch
      %125 = sbr.rel (0) target = $region45
    $region44: #{tpu_custom_call.1} parent=1 // pred_region
      _
    $region45: #{tpu_custom_call.1} parent=1 // pred_fallthru
      _
    // Predicated region
    $region46: #{tpu_custom_call.1} parent=1 // pred_check
      _
    $region47: #{tpu_custom_call.1} parent=1 // pred_check_branch
      %127 = sbr.rel (0) target = $region49
    $region48: #{tpu_custom_call.1} parent=1 // pred_region
      _
    $region49: #{tpu_custom_call.1} parent=1 // pred_fallthru
      _
    // Predicated region
    $region50: #{tpu_custom_call.1} parent=1 // pred_check
      _
    $region51: #{tpu_custom_call.1} parent=1 // pred_check_branch
      %129 = sbr.rel (0) target = $region53
    $region52: #{tpu_custom_call.1} parent=1 // pred_region
      _
    $region53: #{tpu_custom_call.1} parent=1 // pred_fallthru
      _
    // Predicated region
    $region54: #{tpu_custom_call.1} parent=1 // pred_check
      _
    $region55: #{tpu_custom_call.1} parent=1 // pred_check_branch
      %131 = sbr.rel (0) target = $region57
    $region56: #{tpu_custom_call.1} parent=1 // pred_region
      _
    $region57: #{tpu_custom_call.1} parent=1 // pred_fallthru
      _
    // Predicated region
    $region58: #{tpu_custom_call.1} parent=1 // pred_check
      _
    $region59: #{tpu_custom_call.1} parent=1 // pred_check_branch
      %133 = sbr.rel (0) target = $region61
    $region60: #{tpu_custom_call.1} parent=1 // pred_region
      %s135 = ssub.s32 512, 512
      %136 = vsyncadd [#allocation18], %s135
      %s137 = sshll.u32 [#allocation17], 4
      %s138 = int_to_ptr.vmem [resolvable:$true] %s137
      %143 = dma.hbm_to_vmem [thread:$0]  %s14, 512, %s138, [#allocation18], 128, 128, 8
    $region61: #{tpu_custom_call.1} parent=1 // pred_fallthru
      _
    // Predicated region
    $region62: #{tpu_custom_call.1} parent=1 // pred_check
      _
    $region63: #{tpu_custom_call.1} parent=1 // pred_check_branch
      %145 = sbr.rel (0) target = $region65
    $region64: #{tpu_custom_call.1} parent=1 // pred_region
      _
    $region65: #{tpu_custom_call.1} parent=1 // pred_fallthru
      _
    // Predicated region
    $region66: #{tpu_custom_call.1} parent=1 // pred_check
      _
    $region67: #{tpu_custom_call.1} parent=1 // pred_check_branch
      %147 = sbr.rel (0) target = $region69
    $region68: #{tpu_custom_call.1} parent=1 // pred_region
      %148 = dma.done [#allocation3], 128
    $region69: #{tpu_custom_call.1} parent=1 // pred_fallthru
      _
    // Predicated region
    $region70: #{tpu_custom_call.1} parent=1 // pred_check
      _
    $region71: #{tpu_custom_call.1} parent=1 // pred_check_branch
      %150 = sbr.rel (0) target = $region73
    $region72: #{tpu_custom_call.1} parent=1 // pred_region
      %151 = dma.done [#allocation6], 16
    $region73: #{tpu_custom_call.1} parent=1 // pred_fallthru
      _
    // Predicated region
    $region74: #{tpu_custom_call.1} parent=1 // pred_check
      _
    $region75: #{tpu_custom_call.1} parent=1 // pred_check_branch
      %153 = sbr.rel (0) target = $region77
    $region76: #{tpu_custom_call.1} parent=1 // pred_region
      %154 = dma.done [#allocation6], 128
    $region77: #{tpu_custom_call.1} parent=1 // pred_fallthru
      _
    // Predicated region
    $region78: #{tpu_custom_call.1} parent=1 // pred_check
      _
    $region79: #{tpu_custom_call.1} parent=1 // pred_check_branch
      %156 = sbr.rel (0) target = $region81
    $region80: #{tpu_custom_call.1} parent=1 // pred_region
      %157 = dma.done [#allocation9], 128
    $region81: #{tpu_custom_call.1} parent=1 // pred_fallthru
      _
    // Predicated region
    $region82: #{tpu_custom_call.1} parent=1 // pred_check
      _
    $region83: #{tpu_custom_call.1} parent=1 // pred_check_branch
      %159 = sbr.rel (0) target = $region85
    $region84: #{tpu_custom_call.1} parent=1 // pred_region
      %160 = dma.done [#allocation9], 16
    $region85: #{tpu_custom_call.1} parent=1 // pred_fallthru
      _
    // Predicated region
    $region86: #{tpu_custom_call.1} parent=1 // pred_check
      _
    $region87: #{tpu_custom_call.1} parent=1 // pred_check_branch
      %162 = sbr.rel (0) target = $region89
    $region88: #{tpu_custom_call.1} parent=1 // pred_region
      %163 = dma.done [#allocation12], 16
    $region89: #{tpu_custom_call.1} parent=1 // pred_fallthru
      _
    // Predicated region
    $region90: #{tpu_custom_call.1} parent=1 // pred_check
      _
    $region91: #{tpu_custom_call.1} parent=1 // pred_check_branch
      %165 = sbr.rel (0) target = $region93
    $region92: #{tpu_custom_call.1} parent=1 // pred_region
      %166 = dma.done [#allocation12], 384
    $region93: #{tpu_custom_call.1} parent=1 // pred_fallthru
      _
    // Predicated region
    $region94: #{tpu_custom_call.1} parent=1 // pred_check
      _
    $region95: #{tpu_custom_call.1} parent=1 // pred_check_branch
      %168 = sbr.rel (0) target = $region97
    $region96: #{tpu_custom_call.1} parent=1 // pred_region
      %169 = dma.done [#allocation15], 256
    $region97: #{tpu_custom_call.1} parent=1 // pred_fallthru
      _
    // Predicated region
    $region98: #{tpu_custom_call.1} parent=1 // pred_check
      _
    $region99: #{tpu_custom_call.1} parent=1 // pred_check_branch
      %171 = sbr.rel (0) target = $region101
    $region100: #{tpu_custom_call.1} parent=1 // pred_region
      %172 = dma.done [#allocation15], 16
    $region101: #{tpu_custom_call.1} parent=1 // pred_fallthru
      _
    // Predicated region
    $region102: #{tpu_custom_call.1} parent=1 // pred_check
      _
    $region103: #{tpu_custom_call.1} parent=1 // pred_check_branch
      %174 = sbr.rel (0) target = $region105
    $region104: #{tpu_custom_call.1} parent=1 // pred_region
      %175 = dma.done [#allocation18], 512
    $region105: #{tpu_custom_call.1} parent=1 // pred_fallthru
      _
    %v176 = vld [vmem:[#allocation2] sm:$0xff]
    %v177 = vld [vmem:[#allocation5] sm:$0x1]
    %179 = vset.pattern.permute.xlu0 24
    %180 = vperm.xlu0 %179, %v176
    %v181 = vpop.permute.xlu0 %180
    %v184 = vlaneseq
    %v185 = vshrl.u32 %v184, 7
    %v186 = vsub.s32 0, %v185
    %v187 = vrot.slane %v177, %v186
    %v189 = vmul.f32 %v181, %v187
    %v190 = vand.u32 2147483647, %v189
    %vm191 = vcmp.le.f32.partialorder %v190, 0.7853982
    %vm192 = vcmp.lt.s32.totalorder %v189, 0
    %v193 = vand.u32 %v189, 2139095040
    %v194 = vshrl.u32 %v193, 23
    %v195 = vsub.s32 %v194, 127
    %v196 = vand.u32 2147483647, %v189
    %v197 = vand.u32 %v196, 8388607
    %v198 = vor.u32 %v197, 8388608
    %v199 = vsub.s32 0, %v198
    %v200 = vadd.s32 %v195, 1
    %vm201 = vcmp.gt.s32.totalorder %v200, 0
    %v202 = vsel %vm201, %v200, 0
    %v203 = vshrl.u32 %v202, 5
    %v204 = vand.u32 %v202, 31
    %v205 = vsub.s32 32, %v204
    %v206 = vshrl.u32 683565275, %v205
    %v207 = vshll.u32 683565275, %v204
    %v208 = vshrl.u32 2475754826, %v205
    %v209 = vor.u32 %v207, %v208
    %v210 = vshll.u32 2475754826, %v204
    %v211 = vshrl.u32 2131351028, %v205
    %v212 = vor.u32 %v210, %v211
    %v213 = vshll.u32 2131351028, %v204
    %v214 = vshrl.u32 2102212464, %v205
    %v215 = vor.u32 %v213, %v214
    %v216 = vshll.u32 2102212464, %v204
    %v217 = vshrl.u32 920167782, %v205
    %v218 = vor.u32 %v216, %v217
    %v219 = vshll.u32 920167782, %v204
    %v220 = vshrl.u32 1326507024, %v205
    %v221 = vor.u32 %v219, %v220
    %vm222 = vcmp.lt.s32.totalorder %v203, 1
    %vm223 = vcmp.lt.s32.totalorder %v203, 2
    %vm224 = vcmp.lt.s32.totalorder %v203, 3
    %vm225 = vcmp.lt.s32.totalorder %v203, 4
    %v226 = vsel %vm222, %v206, %v209
    %v227 = vsel %vm225, %v215, 2102212464
    %v228 = vsel %vm224, %v212, %v227
    %v229 = vsel %vm223, %v226, %v228
    %v230 = vsel %vm222, %v209, %v212
    %v231 = vsel %vm225, %v218, 920167782
    %v232 = vsel %vm224, %v215, %v231
    %v233 = vsel %vm223, %v230, %v232
    %v234 = vsel %vm222, %v212, %v215
    %v235 = vsel %vm225, %v221, 1326507024
    %v236 = vsel %vm224, %v218, %v235
    %v237 = vsel %vm223, %v234, %v236
    %v238 = vshll.u32 %v198, 8
    %v239 = vmul.u32.u64.compose %v238, %v237
    %v240 = vextract.low.u32 %v239
    %v241 = vextract.high.u32 %v239
    %v242 = vmul.u32.u64.compose %v238, %v233
    %v243 = vextract.low.u32 %v242
    %v244 = vextract.high.u32 %v242
    %v245 = vmul.u32 %v238, %v229
    %v246 = vadd.s32 %v241, %v243
    %vm247 = vc.u32 %v241, %v243
    %v248 = vadd.s32 %v244, 1
    %v249 = vsel %vm247, %v248, %v244
    %v250 = vadd.s32 %v245, %v249
    %v251 = vadd.s32 %v250, 536870912
    %v252 = vshrl.u32 %v251, 30
    %v253 = vshll.u32 %v252, 30
    %v254 = vsub.s32 %v250, %v253
    %vm255 = vcmp.lt.s32.totalorder %v254, 0
    %v256 = vsub.s32 0, %v254
    %v257 = vsel %vm255, %v256, %v254
    %v258 = vclz %v257
    %v259 = vsub.s32 %v258, 2
    %vm260 = vcmp.gt.s32.totalorder 0, %v259
    %v261 = vsel %vm260, 0, %v259
    %v262 = vsub.s32 32, %v261
    %v263 = vshll.u32 %v254, %v261
    %v264 = vshrl.u32 %v246, %v262
    %v265 = vor.u32 %v263, %v264
    %v266 = vsub.s32 4294967266, %v261
    %v267 = vadd.s32 %v266, 127
    %v268 = vshll.u32 %v267, 23
    %v269 = vor.u32 4788187, %v268
    %v270 = vand.u32 2147483647, %v269
    %v272 = vcvt.s32.f32 %v265
    %v273 = vmul.f32 %v272, %v270
    %v274 = vxor.u32 %v273, 2147483648
    %v275 = vsel %vm192, %v274, %v273
    %v276 = vsub.s32 4, %v252
    %v277 = vsel %vm192, %v276, %v252
    %v278 = vsel %vm191, %v189, %v275
    %v279 = vsel %vm191, 0, %v277
    %v280 = vcosq.f32.pop %v278
    %v281 = vsinq.f32.pop %v278
    %vm282 = vweird.f32 %v189
    %v283 = vadd.s32 %v279, 3
    %v284 = vand.u32 %v283, 3
    %vm285 = vcmp.lt.s32.totalorder %v284, 2
    %vm286 = vcmp.eq.s32.totalorder %v284, 0
    %v287 = vxor.u32 %v281, 2147483648
    %v288 = vsel %vm286, %v280, %v287
    %vm289 = vcmp.eq.s32.totalorder %v284, 2
    %v290 = vxor.u32 %v280, 2147483648
    %v291 = vsel %vm289, %v290, %v281
    %v292 = vsel %vm285, %v288, %v291
    %v293 = vsel %vm282, nan, %v292
    %v294 = vand.u32 2147483647, %v189
    %vm295 = vcmp.le.f32.partialorder %v294, 0.7853982
    %vm296 = vcmp.lt.s32.totalorder %v189, 0
    %v297 = vand.u32 %v189, 2139095040
    %v298 = vshrl.u32 %v297, 23
    %v299 = vsub.s32 %v298, 127
    %v300 = vand.u32 2147483647, %v189
    %v301 = vand.u32 %v300, 8388607
    %v302 = vor.u32 %v301, 8388608
    %v303 = vsub.s32 0, %v302
    %v304 = vadd.s32 %v299, 1
    %vm305 = vcmp.gt.s32.totalorder %v304, 0
    %v306 = vsel %vm305, %v304, 0
    %v307 = vshrl.u32 %v306, 5
    %v308 = vand.u32 %v306, 31
    %v309 = vsub.s32 32, %v308
    %v310 = vshrl.u32 683565275, %v309
    %v311 = vshll.u32 683565275, %v308
    %v312 = vshrl.u32 2475754826, %v309
    %v313 = vor.u32 %v311, %v312
    %v314 = vshll.u32 2475754826, %v308
    %v315 = vshrl.u32 2131351028, %v309
    %v316 = vor.u32 %v314, %v315
    %v317 = vshll.u32 2131351028, %v308
    %v318 = vshrl.u32 2102212464, %v309
    %v319 = vor.u32 %v317, %v318
    %v320 = vshll.u32 2102212464, %v308
    %v321 = vshrl.u32 920167782, %v309
    %v322 = vor.u32 %v320, %v321
    %v323 = vshll.u32 920167782, %v308
    %v324 = vshrl.u32 1326507024, %v309
    %v325 = vor.u32 %v323, %v324
    %vm326 = vcmp.lt.s32.totalorder %v307, 1
    %vm327 = vcmp.lt.s32.totalorder %v307, 2
    %vm328 = vcmp.lt.s32.totalorder %v307, 3
    %vm329 = vcmp.lt.s32.totalorder %v307, 4
    %v330 = vsel %vm326, %v310, %v313
    %v331 = vsel %vm329, %v319, 2102212464
    %v332 = vsel %vm328, %v316, %v331
    %v333 = vsel %vm327, %v330, %v332
    %v334 = vsel %vm326, %v313, %v316
    %v335 = vsel %vm329, %v322, 920167782
    %v336 = vsel %vm328, %v319, %v335
    %v337 = vsel %vm327, %v334, %v336
    %v338 = vsel %vm326, %v316, %v319
    %v339 = vsel %vm329, %v325, 1326507024
    %v340 = vsel %vm328, %v322, %v339
    %v341 = vsel %vm327, %v338, %v340
    %v342 = vshll.u32 %v302, 8
    %v343 = vmul.u32.u64.compose %v342, %v341
    %v344 = vextract.low.u32 %v343
    %v345 = vextract.high.u32 %v343
    %v346 = vmul.u32.u64.compose %v342, %v337
    %v347 = vextract.low.u32 %v346
    %v348 = vextract.high.u32 %v346
    %v349 = vmul.u32 %v342, %v333
    %v350 = vadd.s32 %v345, %v347
    %vm351 = vc.u32 %v345, %v347
    %v352 = vadd.s32 %v348, 1
    %v353 = vsel %vm351, %v352, %v348
    %v354 = vadd.s32 %v349, %v353
    %v355 = vadd.s32 %v354, 536870912
    %v356 = vshrl.u32 %v355, 30
    %v357 = vshll.u32 %v356, 30
    %v358 = vsub.s32 %v354, %v357
    %vm359 = vcmp.lt.s32.totalorder %v358, 0
    %v360 = vsub.s32 0, %v358
    %v361 = vsel %vm359, %v360, %v358
    %v362 = vclz %v361
    %v363 = vsub.s32 %v362, 2
    %vm364 = vcmp.gt.s32.totalorder 0, %v363
    %v365 = vsel %vm364, 0, %v363
    %v366 = vsub.s32 32, %v365
    %v367 = vshll.u32 %v358, %v365
    %v368 = vshrl.u32 %v350, %v366
    %v369 = vor.u32 %v367, %v368
    %v370 = vsub.s32 4294967266, %v365
    %v371 = vadd.s32 %v370, 127
    %v372 = vshll.u32 %v371, 23
    %v373 = vor.u32 4788187, %v372
    %v374 = vand.u32 2147483647, %v373
    %v376 = vcvt.s32.f32 %v369
    %v377 = vmul.f32 %v376, %v374
    %v378 = vxor.u32 %v377, 2147483648
    %v379 = vsel %vm296, %v378, %v377
    %v380 = vsub.s32 4, %v356
    %v381 = vsel %vm296, %v380, %v356
    %v382 = vsel %vm295, %v189, %v379
    %v383 = vsel %vm295, 0, %v381
    %v384 = vcosq.f32.pop %v382
    %v385 = vsinq.f32.pop %v382
    %vm386 = vweird.f32 %v189
    %v387 = vand.u32 %v383, 3
    %vm388 = vcmp.lt.s32.totalorder %v387, 2
    %vm389 = vcmp.eq.s32.totalorder %v387, 0
    %v390 = vxor.u32 %v385, 2147483648
    %v391 = vsel %vm389, %v384, %v390
    %vm392 = vcmp.eq.s32.totalorder %v387, 2
    %v393 = vxor.u32 %v384, 2147483648
    %v394 = vsel %vm392, %v393, %v385
    %v395 = vsel %vm388, %v391, %v394
    %v396 = vsel %vm386, nan, %v395
    %v397 = vld [vmem:[#allocation7] sm:$0xff]
    %v398 = vld [vmem:[#allocation8] sm:$0xff]
    %vm399 = vcmask 64512
    %v401 = vsel %vm399, %v396, 0
    %403 = vmatprep.subr.mxu0 0.0
    %404 = vmatpush1.msra.mxu0 0.0
    %405 = vmatprep.subr.mxu0 0.0
    %406 = vmatpush1.msra.mxu0 0.0
    %407 = vmatprep.subr.mxu0 0.0
    %408 = vmatpush1.msra.mxu0 0.0
    %409 = vmatprep.subr.mxu0 0.0
    %410 = vmatpush1.msra.mxu0 0.0
    %411 = vmatprep.subr.mxu0 0.0
    %412 = vmatpush1.msra.mxu0 0.0
    %413 = vmatprep.subr.mxu0 0.0
    %414 = vmatpush1.msra.mxu0 0.0
    %415 = vmatprep.subr.mxu0 0.0
    %416 = vmatpush1.msra.mxu0 0.0
    %417 = vmatprep.subr.mxu0 0.0
    %418 = vmatpush1.msra.mxu0 0.0
    %419 = vmatprep.subr.mxu0 0.0
    %420 = vmatpush1.msra.mxu0 0.0
    %421 = vmatprep.subr.mxu0 0.0
    %422 = vmatpush1.msra.mxu0 0.0
    %423 = vmatprep.subr.mxu0 0.0
    %424 = vmatpush1.msra.mxu0 0.0
    %425 = vmatprep.subr.mxu0 0.0
    %426 = vmatpush1.msra.mxu0 0.0
    %427 = vmatprep.subr.mxu0 0.0
    %428 = vmatpush1.msra.mxu0 0.0
    %429 = vmatprep.subr.mxu0 0.0
    %430 = vmatpush1.msra.mxu0 0.0
    %431 = vmatprep.subr.mxu0 0.0
    %432 = vmatpush1.msra.mxu0 0.0
    %433 = vmatprep.subr.mxu0 0.0
    %434 = vmatpush1.msra.mxu0 %v398
    %435 = vmatprep.subr.mxu0 0.0
    %436 = vmatpush2.msra.mxu0 0.0
    %437 = vmatprep.subr.mxu0 0.0
    %438 = vmatpush2.msra.mxu0 0.0
    %439 = vmatprep.subr.mxu0 0.0
    %440 = vmatpush2.msra.mxu0 0.0
    %441 = vmatprep.subr.mxu0 0.0
    %442 = vmatpush2.msra.mxu0 0.0
    %443 = vmatprep.subr.mxu0 0.0
    %444 = vmatpush2.msra.mxu0 0.0
    %445 = vmatprep.subr.mxu0 0.0
    %446 = vmatpush2.msra.mxu0 0.0
    %447 = vmatprep.subr.mxu0 0.0
    %448 = vmatpush2.msra.mxu0 0.0
    %449 = vmatprep.subr.mxu0 0.0
    %450 = vmatpush2.msra.mxu0 0.0
    %451 = vmatprep.subr.mxu0 0.0
    %452 = vmatpush2.msra.mxu0 0.0
    %453 = vmatprep.subr.mxu0 0.0
    %454 = vmatpush2.msra.mxu0 0.0
    %455 = vmatprep.subr.mxu0 0.0
    %456 = vmatpush2.msra.mxu0 0.0
    %457 = vmatprep.subr.mxu0 0.0
    %458 = vmatpush2.msra.mxu0 0.0
    %459 = vmatprep.subr.mxu0 0.0
    %460 = vmatpush2.msra.mxu0 0.0
    %461 = vmatprep.subr.mxu0 0.0
    %462 = vmatpush2.msra.mxu0 0.0
    %463 = vmatprep.subr.mxu0 0.0
    %464 = vmatpush2.msra.mxu0 0.0
    %465 = vmatprep.subr.mxu0 0.0
    %466 = vmatpush2.msra.mxu0 0.0
    %467 = vmatprep.mubr.f32.mxu0 0.0
    %468 = vmatmul.mubr.f32.gmra.mxu0 %v401
    %v469 = vpop.f32.mrf.mxu0
    %v470 = vadd.f32 0.0, %v469
    %v471 = vpop.f32.mrf.mxu0
    %472 = vdwg.mxu0
    %v474 = vsel %vm399, %v293, 0
    %476 = vmatprep.subr.mxu0 0.0
    %477 = vmatpush1.msra.mxu0 0.0
    %478 = vmatprep.subr.mxu0 0.0
    %479 = vmatpush1.msra.mxu0 0.0
    %480 = vmatprep.subr.mxu0 0.0
    %481 = vmatpush1.msra.mxu0 0.0
    %482 = vmatprep.subr.mxu0 0.0
    %483 = vmatpush1.msra.mxu0 0.0
    %484 = vmatprep.subr.mxu0 0.0
    %485 = vmatpush1.msra.mxu0 0.0
    %486 = vmatprep.subr.mxu0 0.0
    %487 = vmatpush1.msra.mxu0 0.0
    %488 = vmatprep.subr.mxu0 0.0
    %489 = vmatpush1.msra.mxu0 0.0
    %490 = vmatprep.subr.mxu0 0.0
    %491 = vmatpush1.msra.mxu0 0.0
    %492 = vmatprep.subr.mxu0 0.0
    %493 = vmatpush1.msra.mxu0 0.0
    %494 = vmatprep.subr.mxu0 0.0
    %495 = vmatpush1.msra.mxu0 0.0
    %496 = vmatprep.subr.mxu0 0.0
    %497 = vmatpush1.msra.mxu0 0.0
    %498 = vmatprep.subr.mxu0 0.0
    %499 = vmatpush1.msra.mxu0 0.0
    %500 = vmatprep.subr.mxu0 0.0
    %501 = vmatpush1.msra.mxu0 0.0
    %502 = vmatprep.subr.mxu0 0.0
    %503 = vmatpush1.msra.mxu0 0.0
    %504 = vmatprep.subr.mxu0 0.0
    %505 = vmatpush1.msra.mxu0 0.0
    %506 = vmatprep.subr.mxu0 0.0
    %507 = vmatpush1.msra.mxu0 %v397
    %508 = vmatprep.subr.mxu0 0.0
    %509 = vmatpush2.msra.mxu0 0.0
    %510 = vmatprep.subr.mxu0 0.0
    %511 = vmatpush2.msra.mxu0 0.0
    %512 = vmatprep.subr.mxu0 0.0
    %513 = vmatpush2.msra.mxu0 0.0
    %514 = vmatprep.subr.mxu0 0.0
    %515 = vmatpush2.msra.mxu0 0.0
    %516 = vmatprep.subr.mxu0 0.0
    %517 = vmatpush2.msra.mxu0 0.0
    %518 = vmatprep.subr.mxu0 0.0
    %519 = vmatpush2.msra.mxu0 0.0
    %520 = vmatprep.subr.mxu0 0.0
    %521 = vmatpush2.msra.mxu0 0.0
    %522 = vmatprep.subr.mxu0 0.0
    %523 = vmatpush2.msra.mxu0 0.0
    %524 = vmatprep.subr.mxu0 0.0
    %525 = vmatpush2.msra.mxu0 0.0
    %526 = vmatprep.subr.mxu0 0.0
    %527 = vmatpush2.msra.mxu0 0.0
    %528 = vmatprep.subr.mxu0 0.0
    %529 = vmatpush2.msra.mxu0 0.0
    %530 = vmatprep.subr.mxu0 0.0
    %531 = vmatpush2.msra.mxu0 0.0
    %532 = vmatprep.subr.mxu0 0.0
    %533 = vmatpush2.msra.mxu0 0.0
    %534 = vmatprep.subr.mxu0 0.0
    %535 = vmatpush2.msra.mxu0 0.0
    %536 = vmatprep.subr.mxu0 0.0
    %537 = vmatpush2.msra.mxu0 0.0
    %538 = vmatprep.subr.mxu0 0.0
    %539 = vmatpush2.msra.mxu0 0.0
    %540 = vmatprep.mubr.f32.mxu0 0.0
    %541 = vmatmul.mubr.f32.gmra.mxu0 %v474
    %v542 = vpop.f32.mrf.mxu0
    %v543 = vadd.f32 %v470, %v542
    %v544 = vpop.f32.mrf.mxu0
    %545 = vdwg.mxu0
    %v546 = vld [vmem:[#allocation10] sm:$0x1]
    %v548 = vlaneseq
    %v549 = vshrl.u32 %v548, 7
    %v550 = vsub.s32 0, %v549
    %v551 = vrot.slane %v546, %v550
    %v553 = vadd.f32 %v543, %v551
    %v554 = vmax.f32 %v553, 0.0
    %vm555 = vcmp.ne.f32.partialorder %v553, %v553
    %v556 = vadd.f32 %v553, 0.0
    %v557 = vand.u32 2147483647, %v553
    %v558 = vsub.f32 0.0, %v557
    %v559 = vmul.f32 %v558, 1.442695
    %v560 = vpow.pop %v559
    %v561 = vadd.f32 %v560, 1.0
    %v562 = vlog2.pop %v561
    %v563 = vmul.f32 %v562, 0.6931472
    %v564 = vmul.f32 -0.5, %v560
    %v565 = vadd.f32 %v564, 1.0
    %v566 = vmul.f32 %v565, %v560
    %v567 = vand.u32 2147483647, %v560
    %vm568 = vcmp.lt.f32.partialorder %v567, 0.0004427343
    %v569 = vsel %vm568, %v566, %v563
    %v570 = vadd.f32 %v554, %v569
    %v571 = vsel %vm555, %v556, %v570
    %v572 = vtanh.pop %v571
    %v573 = vmul.f32 %v553, %v572
    %v574 = vld [vmem:[%s5] sm:$0xff]
    %v575 = vld [vmem:[%s5 + $0x8] sm:$0xff]
    %v576 = vld [vmem:[%s5 + $0x10] sm:$0xff]
    %v577 = vld [vmem:[%s5 + $0x18] sm:$0xff]
    %v578 = vld [vmem:[#allocation11] sm:$0x1]
    %v580 = vlaneseq
    %v581 = vshrl.u32 %v580, 7
    %v582 = vsub.s32 0, %v581
    %v583 = vrot.slane %v578, %v582
    %vm585 = vcmask 261120
    %v587 = vsel %vm585, %v573, 0
    %589 = vmatprep.subr.mxu0 0.0
    %590 = vmatpush1.msra.mxu0 0.0
    %591 = vmatprep.subr.mxu0 0.0
    %592 = vmatpush1.msra.mxu0 0.0
    %593 = vmatprep.subr.mxu0 0.0
    %594 = vmatpush1.msra.mxu0 0.0
    %595 = vmatprep.subr.mxu0 0.0
    %596 = vmatpush1.msra.mxu0 0.0
    %597 = vmatprep.subr.mxu0 0.0
    %598 = vmatpush1.msra.mxu0 0.0
    %599 = vmatprep.subr.mxu0 0.0
    %600 = vmatpush1.msra.mxu0 0.0
    %601 = vmatprep.subr.mxu0 0.0
    %602 = vmatpush1.msra.mxu0 0.0
    %603 = vmatprep.subr.mxu0 0.0
    %604 = vmatpush1.msra.mxu0 0.0
    %605 = vmatprep.subr.mxu0 0.0
    %606 = vmatpush1.msra.mxu0 0.0
    %607 = vmatprep.subr.mxu0 0.0
    %608 = vmatpush1.msra.mxu0 0.0
    %609 = vmatprep.subr.mxu0 0.0
    %610 = vmatpush1.msra.mxu0 0.0
    %611 = vmatprep.subr.mxu0 0.0
    %612 = vmatpush1.msra.mxu0 0.0
    %613 = vmatprep.subr.mxu0 0.0
    %614 = vmatpush1.msra.mxu0 %v577
    %615 = vmatprep.subr.mxu0 0.0
    %616 = vmatpush1.msra.mxu0 %v576
    %617 = vmatprep.subr.mxu0 0.0
    %618 = vmatpush1.msra.mxu0 %v575
    %619 = vmatprep.subr.mxu0 0.0
    %620 = vmatpush1.msra.mxu0 %v574
    %621 = vmatprep.subr.mxu0 0.0
    %622 = vmatpush2.msra.mxu0 0.0
    %623 = vmatprep.subr.mxu0 0.0
    %624 = vmatpush2.msra.mxu0 0.0
    %625 = vmatprep.subr.mxu0 0.0
    %626 = vmatpush2.msra.mxu0 0.0
    %627 = vmatprep.subr.mxu0 0.0
    %628 = vmatpush2.msra.mxu0 0.0
    %629 = vmatprep.subr.mxu0 0.0
    %630 = vmatpush2.msra.mxu0 0.0
    %631 = vmatprep.subr.mxu0 0.0
    %632 = vmatpush2.msra.mxu0 0.0
    %633 = vmatprep.subr.mxu0 0.0
    %634 = vmatpush2.msra.mxu0 0.0
    %635 = vmatprep.subr.mxu0 0.0
    %636 = vmatpush2.msra.mxu0 0.0
    %637 = vmatprep.subr.mxu0 0.0
    %638 = vmatpush2.msra.mxu0 0.0
    %639 = vmatprep.subr.mxu0 0.0
    %640 = vmatpush2.msra.mxu0 0.0
    %641 = vmatprep.subr.mxu0 0.0
    %642 = vmatpush2.msra.mxu0 0.0
    %643 = vmatprep.subr.mxu0 0.0
    %644 = vmatpush2.msra.mxu0 0.0
    %645 = vmatprep.subr.mxu0 0.0
    %646 = vmatpush2.msra.mxu0 0.0
    %647 = vmatprep.subr.mxu0 0.0
    %648 = vmatpush2.msra.mxu0 0.0
    %649 = vmatprep.subr.mxu0 0.0
    %650 = vmatpush2.msra.mxu0 0.0
    %651 = vmatprep.subr.mxu0 0.0
    %652 = vmatpush2.msra.mxu0 0.0
    %653 = vmatprep.mubr.f32.mxu0 0.0
    %654 = vmatmul.mubr.f32.gmra.mxu0 %v587
    %v655 = vpop.f32.mrf.mxu0
    %v656 = vadd.f32 %v583, %v655
    %v657 = vpop.f32.mrf.mxu0
    %658 = vdwg.mxu0
    %v659 = vld [vmem:[#allocation13] sm:$0xff]
    %v660 = vld [vmem:[#allocation13 + $0x8] sm:$0xff]
    %v661 = vld [vmem:[#allocation13 + $0x10] sm:$0xff]
    %v662 = vld [vmem:[#allocation14] sm:$0xff]
    %v663 = vld [vmem:[#allocation14 + $0x8] sm:$0xff]
    %vm664 = vcmask 130048
    %v666 = vsel %vm664, %v656, 0
    %668 = vmatprep.subr.mxu0 0.0
    %669 = vmatpush1.msra.mxu0 0.0
    %670 = vmatprep.subr.mxu0 0.0
    %671 = vmatpush1.msra.mxu0 0.0
    %672 = vmatprep.subr.mxu0 0.0
    %673 = vmatpush1.msra.mxu0 0.0
    %674 = vmatprep.subr.mxu0 0.0
    %675 = vmatpush1.msra.mxu0 0.0
    %676 = vmatprep.subr.mxu0 0.0
    %677 = vmatpush1.msra.mxu0 0.0
    %678 = vmatprep.subr.mxu0 0.0
    %679 = vmatpush1.msra.mxu0 0.0
    %680 = vmatprep.subr.mxu0 0.0
    %681 = vmatpush1.msra.mxu0 0.0
    %682 = vmatprep.subr.mxu0 0.0
    %683 = vmatpush1.msra.mxu0 0.0
    %684 = vmatprep.subr.mxu0 0.0
    %685 = vmatpush1.msra.mxu0 0.0
    %686 = vmatprep.subr.mxu0 0.0
    %687 = vmatpush1.msra.mxu0 0.0
    %688 = vmatprep.subr.mxu0 0.0
    %689 = vmatpush1.msra.mxu0 0.0
    %690 = vmatprep.subr.mxu0 0.0
    %691 = vmatpush1.msra.mxu0 0.0
    %692 = vmatprep.subr.mxu0 0.0
    %693 = vmatpush1.msra.mxu0 0.0
    %694 = vmatprep.subr.mxu0 0.0
    %695 = vmatpush1.msra.mxu0 0.0
    %696 = vmatprep.subr.mxu0 0.0
    %697 = vmatpush1.msra.mxu0 %v663
    %698 = vmatprep.subr.mxu0 0.0
    %699 = vmatpush1.msra.mxu0 %v662
    %700 = vmatprep.subr.mxu0 0.0
    %701 = vmatpush2.msra.mxu0 0.0
    %702 = vmatprep.subr.mxu0 0.0
    %703 = vmatpush2.msra.mxu0 0.0
    %704 = vmatprep.subr.mxu0 0.0
    %705 = vmatpush2.msra.mxu0 0.0
    %706 = vmatprep.subr.mxu0 0.0
    %707 = vmatpush2.msra.mxu0 0.0
    %708 = vmatprep.subr.mxu0 0.0
    %709 = vmatpush2.msra.mxu0 0.0
    %710 = vmatprep.subr.mxu0 0.0
    %711 = vmatpush2.msra.mxu0 0.0
    %712 = vmatprep.subr.mxu0 0.0
    %713 = vmatpush2.msra.mxu0 0.0
    %714 = vmatprep.subr.mxu0 0.0
    %715 = vmatpush2.msra.mxu0 0.0
    %716 = vmatprep.subr.mxu0 0.0
    %717 = vmatpush2.msra.mxu0 0.0
    %718 = vmatprep.subr.mxu0 0.0
    %719 = vmatpush2.msra.mxu0 0.0
    %720 = vmatprep.subr.mxu0 0.0
    %721 = vmatpush2.msra.mxu0 0.0
    %722 = vmatprep.subr.mxu0 0.0
    %723 = vmatpush2.msra.mxu0 0.0
    %724 = vmatprep.subr.mxu0 0.0
    %725 = vmatpush2.msra.mxu0 0.0
    %726 = vmatprep.subr.mxu0 0.0
    %727 = vmatpush2.msra.mxu0 0.0
    %728 = vmatprep.subr.mxu0 0.0
    %729 = vmatpush2.msra.mxu0 0.0
    %730 = vmatprep.subr.mxu0 0.0
    %731 = vmatpush2.msra.mxu0 0.0
    %732 = vmatprep.mubr.f32.mxu0 0.0
    %733 = vmatmul.mubr.f32.gmra.mxu0 %v666
    %v734 = vpop.f32.mrf.mxu0
    %v735 = vadd.f32 0.0, %v734
    %v736 = vpop.f32.mrf.mxu0
    %737 = vdwg.mxu0
    %vm738 = vcmask 195584
    %v739 = vsel %vm738, %v176, 0
    %741 = vmatprep.subr.mxu0 0.0
    %742 = vmatpush1.msra.mxu0 0.0
    %743 = vmatprep.subr.mxu0 0.0
    %744 = vmatpush1.msra.mxu0 0.0
    %745 = vmatprep.subr.mxu0 0.0
    %746 = vmatpush1.msra.mxu0 0.0
    %747 = vmatprep.subr.mxu0 0.0
    %748 = vmatpush1.msra.mxu0 0.0
    %749 = vmatprep.subr.mxu0 0.0
    %750 = vmatpush1.msra.mxu0 0.0
    %751 = vmatprep.subr.mxu0 0.0
    %752 = vmatpush1.msra.mxu0 0.0
    %753 = vmatprep.subr.mxu0 0.0
    %754 = vmatpush1.msra.mxu0 0.0
    %755 = vmatprep.subr.mxu0 0.0
    %756 = vmatpush1.msra.mxu0 0.0
    %757 = vmatprep.subr.mxu0 0.0
    %758 = vmatpush1.msra.mxu0 0.0
    %759 = vmatprep.subr.mxu0 0.0
    %760 = vmatpush1.msra.mxu0 0.0
    %761 = vmatprep.subr.mxu0 0.0
    %762 = vmatpush1.msra.mxu0 0.0
    %763 = vmatprep.subr.mxu0 0.0
    %764 = vmatpush1.msra.mxu0 0.0
    %765 = vmatprep.subr.mxu0 0.0
    %766 = vmatpush1.msra.mxu0 0.0
    %767 = vmatprep.subr.mxu0 0.0
    %768 = vmatpush1.msra.mxu0 %v661
    %769 = vmatprep.subr.mxu0 0.0
    %770 = vmatpush1.msra.mxu0 %v660
    %771 = vmatprep.subr.mxu0 0.0
    %772 = vmatpush1.msra.mxu0 %v659
    %773 = vmatprep.subr.mxu0 0.0
    %774 = vmatpush2.msra.mxu0 0.0
    %775 = vmatprep.subr.mxu0 0.0
    %776 = vmatpush2.msra.mxu0 0.0
    %777 = vmatprep.subr.mxu0 0.0
    %778 = vmatpush2.msra.mxu0 0.0
    %779 = vmatprep.subr.mxu0 0.0
    %780 = vmatpush2.msra.mxu0 0.0
    %781 = vmatprep.subr.mxu0 0.0
    %782 = vmatpush2.msra.mxu0 0.0
    %783 = vmatprep.subr.mxu0 0.0
    %784 = vmatpush2.msra.mxu0 0.0
    %785 = vmatprep.subr.mxu0 0.0
    %786 = vmatpush2.msra.mxu0 0.0
    %787 = vmatprep.subr.mxu0 0.0
    %788 = vmatpush2.msra.mxu0 0.0
    %789 = vmatprep.subr.mxu0 0.0
    %790 = vmatpush2.msra.mxu0 0.0
    %791 = vmatprep.subr.mxu0 0.0
    %792 = vmatpush2.msra.mxu0 0.0
    %793 = vmatprep.subr.mxu0 0.0
    %794 = vmatpush2.msra.mxu0 0.0
    %795 = vmatprep.subr.mxu0 0.0
    %796 = vmatpush2.msra.mxu0 0.0
    %797 = vmatprep.subr.mxu0 0.0
    %798 = vmatpush2.msra.mxu0 0.0
    %799 = vmatprep.subr.mxu0 0.0
    %800 = vmatpush2.msra.mxu0 0.0
    %801 = vmatprep.subr.mxu0 0.0
    %802 = vmatpush2.msra.mxu0 0.0
    %803 = vmatprep.subr.mxu0 0.0
    %804 = vmatpush2.msra.mxu0 0.0
    %805 = vmatprep.mubr.f32.mxu0 0.0
    %806 = vmatmul.mubr.f32.gmra.mxu0 %v739
    %v807 = vpop.f32.mrf.mxu0
    %v808 = vadd.f32 %v735, %v807
    %v809 = vpop.f32.mrf.mxu0
    %810 = vdwg.mxu0
    %v811 = vld [vmem:[#allocation16] sm:$0x1]
    %v813 = vlaneseq
    %v814 = vshrl.u32 %v813, 7
    %v815 = vsub.s32 0, %v814
    %v816 = vrot.slane %v811, %v815
    %v818 = vadd.f32 %v808, %v816
    %v819 = vmax.f32 %v818, 0.0
    %vm820 = vcmp.ne.f32.partialorder %v818, %v818
    %v821 = vadd.f32 %v818, 0.0
    %v822 = vand.u32 2147483647, %v818
    %v823 = vsub.f32 0.0, %v822
    %v824 = vmul.f32 %v823, 1.442695
    %v825 = vpow.pop %v824
    %v826 = vadd.f32 %v825, 1.0
    %v827 = vlog2.pop %v826
    %v828 = vmul.f32 %v827, 0.6931472
    %v829 = vmul.f32 -0.5, %v825
    %v830 = vadd.f32 %v829, 1.0
    %v831 = vmul.f32 %v830, %v825
    %v832 = vand.u32 2147483647, %v825
    %vm833 = vcmp.lt.f32.partialorder %v832, 0.0004427343
    %v834 = vsel %vm833, %v831, %v828
    %v835 = vadd.f32 %v819, %v834
    %v836 = vsel %vm820, %v821, %v835
    %v837 = vtanh.pop %v836
    %v838 = vmul.f32 %v818, %v837
    %v839 = vld [vmem:[%s10] sm:$0xff]
    %v840 = vld [vmem:[%s10 + $0x8] sm:$0xff]
    %v841 = vld [vmem:[%s10 + $0x10] sm:$0xff]
    %v842 = vld [vmem:[%s10 + $0x18] sm:$0xff]
    %v843 = vld [vmem:[%s11] sm:$0x1]
    %v845 = vlaneseq
    %v846 = vshrl.u32 %v845, 7
    %v847 = vsub.s32 0, %v846
    %v848 = vrot.slane %v843, %v847
    %v851 = vsel %vm585, %v838, 0
    %853 = vmatprep.subr.mxu0 0.0
    %854 = vmatpush1.msra.mxu0 0.0
    %855 = vmatprep.subr.mxu0 0.0
    %856 = vmatpush1.msra.mxu0 0.0
    %857 = vmatprep.subr.mxu0 0.0
    %858 = vmatpush1.msra.mxu0 0.0
    %859 = vmatprep.subr.mxu0 0.0
    %860 = vmatpush1.msra.mxu0 0.0
    %861 = vmatprep.subr.mxu0 0.0
    %862 = vmatpush1.msra.mxu0 0.0
    %863 = vmatprep.subr.mxu0 0.0
    %864 = vmatpush1.msra.mxu0 0.0
    %865 = vmatprep.subr.mxu0 0.0
    %866 = vmatpush1.msra.mxu0 0.0
    %867 = vmatprep.subr.mxu0 0.0
    %868 = vmatpush1.msra.mxu0 0.0
    %869 = vmatprep.subr.mxu0 0.0
    %870 = vmatpush1.msra.mxu0 0.0
    %871 = vmatprep.subr.mxu0 0.0
    %872 = vmatpush1.msra.mxu0 0.0
    %873 = vmatprep.subr.mxu0 0.0
    %874 = vmatpush1.msra.mxu0 0.0
    %875 = vmatprep.subr.mxu0 0.0
    %876 = vmatpush1.msra.mxu0 0.0
    %877 = vmatprep.subr.mxu0 0.0
    %878 = vmatpush1.msra.mxu0 %v842
    %879 = vmatprep.subr.mxu0 0.0
    %880 = vmatpush1.msra.mxu0 %v841
    %881 = vmatprep.subr.mxu0 0.0
    %882 = vmatpush1.msra.mxu0 %v840
    %883 = vmatprep.subr.mxu0 0.0
    %884 = vmatpush1.msra.mxu0 %v839
    %885 = vmatprep.subr.mxu0 0.0
    %886 = vmatpush2.msra.mxu0 0.0
    %887 = vmatprep.subr.mxu0 0.0
    %888 = vmatpush2.msra.mxu0 0.0
    %889 = vmatprep.subr.mxu0 0.0
    %890 = vmatpush2.msra.mxu0 0.0
    %891 = vmatprep.subr.mxu0 0.0
    %892 = vmatpush2.msra.mxu0 0.0
    %893 = vmatprep.subr.mxu0 0.0
    %894 = vmatpush2.msra.mxu0 0.0
    %895 = vmatprep.subr.mxu0 0.0
    %896 = vmatpush2.msra.mxu0 0.0
    %897 = vmatprep.subr.mxu0 0.0
    %898 = vmatpush2.msra.mxu0 0.0
    %899 = vmatprep.subr.mxu0 0.0
    %900 = vmatpush2.msra.mxu0 0.0
    %901 = vmatprep.subr.mxu0 0.0
    %902 = vmatpush2.msra.mxu0 0.0
    %903 = vmatprep.subr.mxu0 0.0
    %904 = vmatpush2.msra.mxu0 0.0
    %905 = vmatprep.subr.mxu0 0.0
    %906 = vmatpush2.msra.mxu0 0.0
    %907 = vmatprep.subr.mxu0 0.0
    %908 = vmatpush2.msra.mxu0 0.0
    %909 = vmatprep.subr.mxu0 0.0
    %910 = vmatpush2.msra.mxu0 0.0
    %911 = vmatprep.subr.mxu0 0.0
    %912 = vmatpush2.msra.mxu0 0.0
    %913 = vmatprep.subr.mxu0 0.0
    %914 = vmatpush2.msra.mxu0 0.0
    %915 = vmatprep.subr.mxu0 0.0
    %916 = vmatpush2.msra.mxu0 0.0
    %917 = vmatprep.mubr.f32.mxu0 0.0
    %918 = vmatmul.mubr.f32.gmra.mxu0 %v851
    %v919 = vpop.f32.mrf.mxu0
    %v920 = vadd.f32 %v848, %v919
    %v921 = vpop.f32.mrf.mxu0
    %922 = vdwg.mxu0
    %v923 = vmax.f32 %v920, 0.0
    %vm924 = vcmp.ne.f32.partialorder %v920, %v920
    %v925 = vadd.f32 %v920, 0.0
    %v926 = vand.u32 2147483647, %v920
    %v927 = vsub.f32 0.0, %v926
    %v928 = vmul.f32 %v927, 1.442695
    %v929 = vpow.pop %v928
    %v930 = vadd.f32 %v929, 1.0
    %v931 = vlog2.pop %v930
    %v932 = vmul.f32 %v931, 0.6931472
    %v933 = vmul.f32 -0.5, %v929
    %v934 = vadd.f32 %v933, 1.0
    %v935 = vmul.f32 %v934, %v929
    %v936 = vand.u32 2147483647, %v929
    %vm937 = vcmp.lt.f32.partialorder %v936, 0.0004427343
    %v938 = vsel %vm937, %v935, %v932
    %v939 = vadd.f32 %v923, %v938
    %v940 = vsel %vm924, %v925, %v939
    %v941 = vtanh.pop %v940
    %v942 = vmul.f32 %v920, %v941
    %v943 = vld [vmem:[%s12] sm:$0xff]
    %v944 = vld [vmem:[%s12 + $0x8] sm:$0xff]
    %v945 = vld [vmem:[%s12 + $0x10] sm:$0xff]
    %v946 = vld [vmem:[%s12 + $0x18] sm:$0xff]
    %v947 = vld [vmem:[%s13] sm:$0x1]
    %v949 = vlaneseq
    %v950 = vshrl.u32 %v949, 7
    %v951 = vsub.s32 0, %v950
    %v952 = vrot.slane %v947, %v951
    %v955 = vsel %vm585, %v942, 0
    %957 = vmatprep.subr.mxu0 0.0
    %958 = vmatpush1.msra.mxu0 0.0
    %959 = vmatprep.subr.mxu0 0.0
    %960 = vmatpush1.msra.mxu0 0.0
    %961 = vmatprep.subr.mxu0 0.0
    %962 = vmatpush1.msra.mxu0 0.0
    %963 = vmatprep.subr.mxu0 0.0
    %964 = vmatpush1.msra.mxu0 0.0
    %965 = vmatprep.subr.mxu0 0.0
    %966 = vmatpush1.msra.mxu0 0.0
    %967 = vmatprep.subr.mxu0 0.0
    %968 = vmatpush1.msra.mxu0 0.0
    %969 = vmatprep.subr.mxu0 0.0
    %970 = vmatpush1.msra.mxu0 0.0
    %971 = vmatprep.subr.mxu0 0.0
    %972 = vmatpush1.msra.mxu0 0.0
    %973 = vmatprep.subr.mxu0 0.0
    %974 = vmatpush1.msra.mxu0 0.0
    %975 = vmatprep.subr.mxu0 0.0
    %976 = vmatpush1.msra.mxu0 0.0
    %977 = vmatprep.subr.mxu0 0.0
    %978 = vmatpush1.msra.mxu0 0.0
    %979 = vmatprep.subr.mxu0 0.0
    %980 = vmatpush1.msra.mxu0 0.0
    %981 = vmatprep.subr.mxu0 0.0
    %982 = vmatpush1.msra.mxu0 %v946
    %983 = vmatprep.subr.mxu0 0.0
    %984 = vmatpush1.msra.mxu0 %v945
    %985 = vmatprep.subr.mxu0 0.0
    %986 = vmatpush1.msra.mxu0 %v944
    %987 = vmatprep.subr.mxu0 0.0
    %988 = vmatpush1.msra.mxu0 %v943
    %989 = vmatprep.subr.mxu0 0.0
    %990 = vmatpush2.msra.mxu0 0.0
    %991 = vmatprep.subr.mxu0 0.0
    %992 = vmatpush2.msra.mxu0 0.0
    %993 = vmatprep.subr.mxu0 0.0
    %994 = vmatpush2.msra.mxu0 0.0
    %995 = vmatprep.subr.mxu0 0.0
    %996 = vmatpush2.msra.mxu0 0.0
    %997 = vmatprep.subr.mxu0 0.0
    %998 = vmatpush2.msra.mxu0 0.0
    %999 = vmatprep.subr.mxu0 0.0
    %1000 = vmatpush2.msra.mxu0 0.0
    %1001 = vmatprep.subr.mxu0 0.0
    %1002 = vmatpush2.msra.mxu0 0.0
    %1003 = vmatprep.subr.mxu0 0.0
    %1004 = vmatpush2.msra.mxu0 0.0
    %1005 = vmatprep.subr.mxu0 0.0
    %1006 = vmatpush2.msra.mxu0 0.0
    %1007 = vmatprep.subr.mxu0 0.0
    %1008 = vmatpush2.msra.mxu0 0.0
    %1009 = vmatprep.subr.mxu0 0.0
    %1010 = vmatpush2.msra.mxu0 0.0
    %1011 = vmatprep.subr.mxu0 0.0
    %1012 = vmatpush2.msra.mxu0 0.0
    %1013 = vmatprep.subr.mxu0 0.0
    %1014 = vmatpush2.msra.mxu0 0.0
    %1015 = vmatprep.subr.mxu0 0.0
    %1016 = vmatpush2.msra.mxu0 0.0
    %1017 = vmatprep.subr.mxu0 0.0
    %1018 = vmatpush2.msra.mxu0 0.0
    %1019 = vmatprep.subr.mxu0 0.0
    %1020 = vmatpush2.msra.mxu0 0.0
    %1021 = vmatprep.mubr.f32.mxu0 0.0
    %1022 = vmatmul.mubr.f32.gmra.mxu0 %v955
    %v1023 = vpop.f32.mrf.mxu0
    %v1024 = vadd.f32 %v952, %v1023
    %v1025 = vpop.f32.mrf.mxu0
    %1026 = vdwg.mxu0
    %v1027 = vmax.f32 %v1024, 0.0
    %vm1028 = vcmp.ne.f32.partialorder %v1024, %v1024
    %v1029 = vadd.f32 %v1024, 0.0
    %v1030 = vand.u32 2147483647, %v1024
    %v1031 = vsub.f32 0.0, %v1030
    %v1032 = vmul.f32 %v1031, 1.442695
    %v1033 = vpow.pop %v1032
    %v1034 = vadd.f32 %v1033, 1.0
    %v1035 = vlog2.pop %v1034
    %v1036 = vmul.f32 %v1035, 0.6931472
    %v1037 = vmul.f32 -0.5, %v1033
    %v1038 = vadd.f32 %v1037, 1.0
    %v1039 = vmul.f32 %v1038, %v1033
    %v1040 = vand.u32 2147483647, %v1033
    %vm1041 = vcmp.lt.f32.partialorder %v1040, 0.0004427343
    %v1042 = vsel %vm1041, %v1039, %v1036
    %v1043 = vadd.f32 %v1027, %v1042
    %v1044 = vsel %vm1028, %v1029, %v1043
    %v1045 = vtanh.pop %v1044
    %v1046 = vmul.f32 %v1024, %v1045
    %v1047 = vld [vmem:[#allocation17] sm:$0xff]
    %v1048 = vld [vmem:[#allocation17 + $0x8] sm:$0xff]
    %v1049 = vld [vmem:[#allocation17 + $0x10] sm:$0xff]
    %v1050 = vld [vmem:[#allocation17 + $0x18] sm:$0xff]
    %v1051 = vld [vmem:[%s15] sm:$0x1]
    %v1053 = vlaneseq
    %v1054 = vshrl.u32 %v1053, 7
    %v1055 = vsub.s32 0, %v1054
    %v1056 = vrot.slane %v1051, %v1055
    %v1059 = vsel %vm585, %v1046, 0
    %1061 = vmatprep.subr.mxu0 0.0
    %1062 = vmatpush1.msra.mxu0 0.0
    %1063 = vmatprep.subr.mxu0 0.0
    %1064 = vmatpush1.msra.mxu0 0.0
    %1065 = vmatprep.subr.mxu0 0.0
    %1066 = vmatpush1.msra.mxu0 0.0
    %1067 = vmatprep.subr.mxu0 0.0
    %1068 = vmatpush1.msra.mxu0 0.0
    %1069 = vmatprep.subr.mxu0 0.0
    %1070 = vmatpush1.msra.mxu0 0.0
    %1071 = vmatprep.subr.mxu0 0.0
    %1072 = vmatpush1.msra.mxu0 0.0
    %1073 = vmatprep.subr.mxu0 0.0
    %1074 = vmatpush1.msra.mxu0 0.0
    %1075 = vmatprep.subr.mxu0 0.0
    %1076 = vmatpush1.msra.mxu0 0.0
    %1077 = vmatprep.subr.mxu0 0.0
    %1078 = vmatpush1.msra.mxu0 0.0
    %1079 = vmatprep.subr.mxu0 0.0
    %1080 = vmatpush1.msra.mxu0 0.0
    %1081 = vmatprep.subr.mxu0 0.0
    %1082 = vmatpush1.msra.mxu0 0.0
    %1083 = vmatprep.subr.mxu0 0.0
    %1084 = vmatpush1.msra.mxu0 0.0
    %1085 = vmatprep.subr.mxu0 0.0
    %1086 = vmatpush1.msra.mxu0 %v1050
    %1087 = vmatprep.subr.mxu0 0.0
    %1088 = vmatpush1.msra.mxu0 %v1049
    %1089 = vmatprep.subr.mxu0 0.0
    %1090 = vmatpush1.msra.mxu0 %v1048
    %1091 = vmatprep.subr.mxu0 0.0
    %1092 = vmatpush1.msra.mxu0 %v1047
    %1093 = vmatprep.subr.mxu0 0.0
    %1094 = vmatpush2.msra.mxu0 0.0
    %1095 = vmatprep.subr.mxu0 0.0
    %1096 = vmatpush2.msra.mxu0 0.0
    %1097 = vmatprep.subr.mxu0 0.0
    %1098 = vmatpush2.msra.mxu0 0.0
    %1099 = vmatprep.subr.mxu0 0.0
    %1100 = vmatpush2.msra.mxu0 0.0
    %1101 = vmatprep.subr.mxu0 0.0
    %1102 = vmatpush2.msra.mxu0 0.0
    %1103 = vmatprep.subr.mxu0 0.0
    %1104 = vmatpush2.msra.mxu0 0.0
    %1105 = vmatprep.subr.mxu0 0.0
    %1106 = vmatpush2.msra.mxu0 0.0
    %1107 = vmatprep.subr.mxu0 0.0
    %1108 = vmatpush2.msra.mxu0 0.0
    %1109 = vmatprep.subr.mxu0 0.0
    %1110 = vmatpush2.msra.mxu0 0.0
    %1111 = vmatprep.subr.mxu0 0.0
    %1112 = vmatpush2.msra.mxu0 0.0
    %1113 = vmatprep.subr.mxu0 0.0
    %1114 = vmatpush2.msra.mxu0 0.0
    %1115 = vmatprep.subr.mxu0 0.0
    %1116 = vmatpush2.msra.mxu0 0.0
    %1117 = vmatprep.subr.mxu0 0.0
    %1118 = vmatpush2.msra.mxu0 0.0
    %1119 = vmatprep.subr.mxu0 0.0
    %1120 = vmatpush2.msra.mxu0 0.0
    %1121 = vmatprep.subr.mxu0 0.0
    %1122 = vmatpush2.msra.mxu0 0.0
    %1123 = vmatprep.subr.mxu0 0.0
    %1124 = vmatpush2.msra.mxu0 0.0
    %1125 = vmatprep.mubr.f32.mxu0 0.0
    %1126 = vmatmul.mubr.f32.gmra.mxu0 %v1059
    %v1127 = vpop.f32.mrf.mxu0
    %v1128 = vadd.f32 %v1056, %v1127
    %v1129 = vpop.f32.mrf.mxu0
    %1130 = vdwg.mxu0
    %1131 = vst [vmem:[#allocation19] sm:$0xff] %v1128
    // Predicated region
    $region106: #{tpu_custom_call.1} parent=1 // pred_check
      _
    $region107: #{tpu_custom_call.1} parent=1 // pred_check_branch
      %1133 = sbr.rel (0) target = $region109
    $region108: #{tpu_custom_call.1} parent=1 // pred_region
      %s1135 = ssub.s32 128, 128
      %1136 = vsyncadd [#allocation4], %s1135
      %s1138 = sshll.u32 [#allocation19], 4
      %s1139 = int_to_ptr.vmem [resolvable:$true] %s1138
      %1141 = dma.vmem_to_hbm [thread:$0]  %s1139, 128, %s16, [#allocation4]
    $region109: #{tpu_custom_call.1} parent=1 // pred_fallthru
      _
    // Predicated region
    $region110: #{tpu_custom_call.1} parent=1 // pred_check
      _
    $region111: #{tpu_custom_call.1} parent=1 // pred_check_branch
      %1143 = sbr.rel (0) target = $region113
    $region112: #{tpu_custom_call.1} parent=1 // pred_region
      %1144 = dma.done [#allocation4], 128
    $region113: #{tpu_custom_call.1} parent=1 // pred_fallthru
      _
    %1145 = vsyncpa [#allocation3], 1
    %1146 = vsyncpa [#allocation6], 1
    %1147 = vsyncpa [#allocation9], 1
    %1148 = vsyncpa [#allocation12], 1
    %1149 = vsyncpa [#allocation15], 1
    %1150 = vsyncpa [#allocation18], 1
    %1151 = vsyncpa [#allocation4], 1

</llo_original>
